<compile_context>
chip_gen: v6e
topology: v6e:2x2x1
jax: 0.10.0
libtpu: 0.0.40
codegen_flags: <defaults>
</compile_context>

<pallas_src>
import math
import functools

import jax
import jax.numpy as jnp
from jax.experimental import pallas as pl
from jax.experimental.pallas import tpu as pltpu


def _layernorm(x, gamma, beta, eps=1e-5):
    mu = jnp.mean(x, axis=-1, keepdims=True)
    var = jnp.mean((x - mu) ** 2, axis=-1, keepdims=True)
    return (x - mu) * jax.lax.rsqrt(var + eps) * gamma + beta


def _gelu_new(x):
    c = math.sqrt(2.0 / math.pi)
    return 0.5 * x * (1.0 + jnp.tanh(c * (x + 0.044715 * x ** 3)))


def transformer_block_kernel(
    q_ref, k_ref, v_ref, qmask_ref, kvmask_ref, kvmask_q_ref, amask_ref,
    wq_ref, bq_ref, wk_ref, bk_ref, wv_ref, bv_ref, wo_ref, bo_ref,
    ln_g_ref, ln_b_ref, w1_ref, b1_ref, w2_ref, b2_ref,
    out_ref,
    *, heads, key_size, out_size, dm_pad,
):
    f32 = jnp.float32
    bf16 = jnp.bfloat16

    q = q_ref[0]              # (Tq,  iS) f32, query tile
    k = k_ref[0]              # (Skv, iS) f32
    v = v_ref[0]              # (Skv, iS) f32
    tq, in_dim = q.shape
    skv = k.shape[0]
    dm = heads * out_size

    qmask = qmask_ref[...]        # (1, Tq, 1)   f32
    kvmask = kvmask_ref[...]      # (1, Skv, 1)  f32
    kvmask_q = kvmask_q_ref[0]    # (Tq, 1)      f32
    amask = amask_ref[...]        # (1, Tq, Skv) f32

    # bf16 only at the MXU boundary; activations stay f32 elsewhere.
    q_bf = q.astype(bf16)
    k_bf = k.astype(bf16)
    v_bf = v.astype(bf16)

    # (H, M, C) x (H, C, N) -> (H, M, N)
    bmm = (((2,), (1,)), ((0,), (0,)))
    # (H, M, C) x (H, N, C) -> (H, M, N)   (contract last dims)
    bmm_t = (((2,), (2,)), ((0,), (0,)))

    # --- QKV projections, heads as the dot_general batch dim ---
    qb = jnp.broadcast_to(q_bf, (heads, tq, in_dim))
    kb = jnp.broadcast_to(k_bf, (heads, skv, in_dim))
    vb = jnp.broadcast_to(v_bf, (heads, skv, in_dim))

    qw = jax.lax.dot_general(qb, wq_ref[...], bmm, preferred_element_type=f32)
    qw = (qw + bq_ref[...]) * qmask                     # (H, Tq, K)
    kw = jax.lax.dot_general(kb, wk_ref[...], bmm, preferred_element_type=f32)
    kw = (kw + bk_ref[...]) * kvmask                    # (H, Skv, K)
    vw = jax.lax.dot_general(vb, wv_ref[...], bmm, preferred_element_type=f32)
    vw = (vw + bv_ref[...]) * kvmask                    # (H, Skv, O)

    # --- scaled dot-product attention (f32 softmax) ---
    qw = qw * (1.0 / math.sqrt(float(key_size)))
    s = jax.lax.dot_general(qw.astype(bf16), kw.astype(bf16), bmm_t,
                            preferred_element_type=f32)             # (H, Tq, Skv)
    s = s - amask
    s = s - jnp.max(s, axis=-1, keepdims=True)
    e = jnp.exp(s)
    p = e * pl.reciprocal(jnp.sum(e, axis=-1, keepdims=True), approx=True)

    oh = jax.lax.dot_general(p.astype(bf16), vw.astype(bf16), bmm,
                             preferred_element_type=f32)            # (H, Tq, O)

    # --- output projection: per-head GEMM against (H, O, Dm), summed over H ---
    od = jax.lax.dot_general(oh.astype(bf16), wo_ref[...], bmm,
                             preferred_element_type=f32)            # (H, Tq, Dm)
    o = jnp.sum(od, axis=0) + bo_ref[...]                           # (Tq, Dm)
    o = o * kvmask_q

    # --- FFN (dropout == identity; shared LayerNorm params, per PyTorch) ---
    gamma = ln_g_ref[...]
    beta = ln_b_ref[...]
    x1 = _layernorm(o + q, gamma, beta)
    hdn = jnp.dot(x1.astype(bf16), w1_ref[...],
                  preferred_element_type=f32) + b1_ref[...]
    hdn = _gelu_new(hdn)
    o2 = jnp.dot(hdn.astype(bf16), w2_ref[...],
                 preferred_element_type=f32) + b2_ref[...]
    out = _layernorm(o2 + x1, gamma, beta)

    # Lane-dense store: pad feature dim to a multiple of 128.
    if dm_pad > dm:
        out = jnp.concatenate(
            [out, jnp.zeros((tq, dm_pad - dm), f32)], axis=-1)
    out_ref[0] = out.astype(out_ref.dtype)


def transformer_block(q, k, v, q_mask, kv_mask, a_mask, params,
                      *, heads, key_size, out_size, q_tile=None):
    f32, bf16 = jnp.float32, jnp.bfloat16
    B, S, iS = q.shape
    Dm = heads * out_size
    assert iS == Dm, "residual add requires iS == heads * out_size"

    # Query-tile size: keep (8,128) alignment; full S for small sequences.
    if q_tile is None:
        q_tile = S
        for cand in (512, 256, 128):
            if S % cand == 0:
                q_tile = cand
                break
    assert S % q_tile == 0
    n_q_tiles = S // q_tile

    Dm_pad = ((Dm + 127) // 128) * 128        # lane-dense output width

    qm = q_mask.reshape(B, S, 1).astype(f32)
    kvm = kv_mask.reshape(B, S, 1).astype(f32)
    am = a_mask.astype(f32)                   # (B, S, S), penalty kept in f32

    def row(x):
        return jnp.asarray(x, f32).reshape(1, -1)

    # Head-major bf16 weights; f32 biases / LayerNorm params.
    wq = jnp.transpose(params["wq"].reshape(iS, heads, key_size), (1, 0, 2)).astype(bf16)
    wk = jnp.transpose(params["wk"].reshape(iS, heads, key_size), (1, 0, 2)).astype(bf16)
    wv = jnp.transpose(params["wv"].reshape(iS, heads, out_size), (1, 0, 2)).astype(bf16)
    wo = params["wo"].reshape(heads, out_size, Dm).astype(bf16)
    bq = params["bq"].reshape(heads, 1, key_size).astype(f32)
    bk = params["bk"].reshape(heads, 1, key_size).astype(f32)
    bv = params["bv"].reshape(heads, 1, out_size).astype(f32)

    weight_args = [
        wq, bq, wk, bk, wv, bv, wo, row(params["bo"]),
        row(params["ln_g"]), row(params["ln_b"]),
        params["w1"].astype(bf16), row(params["b1"]),
        params["w2"].astype(bf16), row(params["b2"]),
    ]

    q_spec = pl.BlockSpec((1, q_tile, iS), lambda b, t: (b, t, 0))
    kv_spec = pl.BlockSpec((1, S, iS), lambda b, t: (b, 0, 0))
    qm_spec = pl.BlockSpec((1, q_tile, 1), lambda b, t: (b, t, 0))
    kvm_full_spec = pl.BlockSpec((1, S, 1), lambda b, t: (b, 0, 0))
    kvm_q_spec = pl.BlockSpec((1, q_tile, 1), lambda b, t: (b, t, 0))
    am_spec = pl.BlockSpec((1, q_tile, S), lambda b, t: (b, t, 0))

    def full_spec(arr):
        nd = arr.ndim
        return pl.BlockSpec(arr.shape, lambda b, t, nd=nd: (0,) * nd)

    in_specs = [q_spec, kv_spec, kv_spec, qm_spec, kvm_full_spec,
                kvm_q_spec, am_spec] + [full_spec(w) for w in weight_args]

    kernel = functools.partial(
        transformer_block_kernel,
        heads=heads, key_size=key_size, out_size=out_size, dm_pad=Dm_pad,
    )

    out = pl.pallas_call(
        kernel,
        out_shape=jax.ShapeDtypeStruct((B, S, Dm_pad), f32),
        grid_spec=pltpu.PrefetchScalarGridSpec(
            num_scalar_prefetch=0,
            grid=(B, n_q_tiles),
            in_specs=in_specs,
            out_specs=pl.BlockSpec((1, q_tile, Dm_pad), lambda b, t: (b, t, 0)),
        ),
        compiler_params=pltpu.CompilerParams(
            dimension_semantics=("parallel", "parallel"),
            vmem_limit_bytes=64 * 1024 * 1024,
        ),
    )(q.astype(f32), k.astype(f32), v.astype(f32), qm, kvm, kvm, am, *weight_args)

    if Dm_pad != Dm:
        out = out[..., :Dm]
    return out


def init_params(key, iS, hS, heads, key_size, out_size):
    Dm = heads * out_size
    ks = jax.random.split(key, 8)

    def lin(k, fan_in, fan_out):
        bound = 1.0 / math.sqrt(fan_in)
        kw, kb = jax.random.split(k)
        w = jax.random.uniform(kw, (fan_in, fan_out), jnp.float32, -bound, bound)
        b = jax.random.uniform(kb, (fan_out,), jnp.float32, -bound, bound)
        return w, b

    wq, bq = lin(ks[0], iS, heads * key_size)
    wk, bk = lin(ks[1], iS, heads * key_size)
    wv, bv = lin(ks[2], iS, Dm)
    wo, bo = lin(ks[3], Dm, Dm)
    w1, b1 = lin(ks[4], Dm, hS)
    w2, b2 = lin(ks[5], hS, Dm)
    ln_g = jnp.ones((Dm,), jnp.float32)
    ln_b = jnp.zeros((Dm,), jnp.float32)
    return dict(wq=wq, bq=bq, wk=wk, bk=bk, wv=wv, bv=bv, wo=wo, bo=bo,
                ln_g=ln_g, ln_b=ln_b, w1=w1, b1=b1, w2=w2, b2=b2)


if __name__ == "__main__":
    # Small shapes: B=2, S=8, heads=2, key_size=16, out_size=16 -> iS=32, hS=64
    B, S = 2, 8
    heads, key_size, out_size = 2, 16, 16
    iS = heads * out_size
    hS = 64

    root = jax.random.PRNGKey(0)
    kp, kq, kk, kv = jax.random.split(root, 4)

    params = init_params(kp, iS, hS, heads, key_size, out_size)

    q = jax.random.normal(kq, (B, S, iS), jnp.float32)
    k = jax.random.normal(kk, (B, S, iS), jnp.float32)
    v = jax.random.normal(kv, (B, S, iS), jnp.float32)

    # padding masks: last position of batch 1 is padding
    q_mask = jnp.ones((B, S), jnp.float32).at[1, -1].set(0.0)
    kv_mask = jnp.ones((B, S), jnp.float32).at[1, -1].set(0.0)
    # language-model mask: big penalty above the diagonal (subtracted in kernel)
    causal_pen = (1.0 - jnp.tril(jnp.ones((S, S), jnp.float32))) * 1e9
    a_mask = jnp.broadcast_to(causal_pen, (B, S, S))

    out = transformer_block(q, k, v, q_mask, kv_mask, a_mask, params,
                            heads=heads, key_size=key_size, out_size=out_size)
    jax.block_until_ready(out)
    assert out.shape == (B, S, heads * out_size)
    print("KERNEL_OK")
</pallas_src>

<mosaic_0001>
module attributes {stable_mosaic.version = 11 : i64} {
  func.func @transformer_block_kernel(%arg0: i32, %arg1: i32, %arg2: memref<1x8x32xf32, #tpu.memory_space<vmem>>, %arg3: memref<1x8x32xf32, #tpu.memory_space<vmem>>, %arg4: memref<1x8x32xf32, #tpu.memory_space<vmem>>, %arg5: memref<1x8x1xf32, #tpu.memory_space<vmem>>, %arg6: memref<1x8x1xf32, #tpu.memory_space<vmem>>, %arg7: memref<1x8x1xf32, #tpu.memory_space<vmem>>, %arg8: memref<1x8x8xf32, #tpu.memory_space<vmem>>, %arg9: memref<2x32x16xbf16, #tpu.memory_space<vmem>>, %arg10: memref<2x1x16xf32, #tpu.memory_space<vmem>>, %arg11: memref<2x32x16xbf16, #tpu.memory_space<vmem>>, %arg12: memref<2x1x16xf32, #tpu.memory_space<vmem>>, %arg13: memref<2x32x16xbf16, #tpu.memory_space<vmem>>, %arg14: memref<2x1x16xf32, #tpu.memory_space<vmem>>, %arg15: memref<2x16x32xbf16, #tpu.memory_space<vmem>>, %arg16: memref<1x32xf32, #tpu.memory_space<vmem>>, %arg17: memref<1x32xf32, #tpu.memory_space<vmem>>, %arg18: memref<1x32xf32, #tpu.memory_space<vmem>>, %arg19: memref<32x64xbf16, #tpu.memory_space<vmem>>, %arg20: memref<1x64xf32, #tpu.memory_space<vmem>>, %arg21: memref<64x32xbf16, #tpu.memory_space<vmem>>, %arg22: memref<1x32xf32, #tpu.memory_space<vmem>>, %arg23: memref<1x8x128xf32, #tpu.memory_space<vmem>>) attributes {dimension_semantics = [#tpu.dimension_semantics<parallel>, #tpu.dimension_semantics<parallel>], iteration_bounds = array<i64: 2, 1>, scalar_prefetch = 0 : i64, scratch_operands = 0 : i64, tpu.core_type = #tpu.core_type<tc>, window_params = [{transform_indices = @transform_0, window_bounds = array<i64: 1, 8, 32>}, {transform_indices = @transform_1, window_bounds = array<i64: 1, 8, 32>}, {transform_indices = @transform_2, window_bounds = array<i64: 1, 8, 32>}, {transform_indices = @transform_3, window_bounds = array<i64: 1, 8, 1>}, {transform_indices = @transform_4, window_bounds = array<i64: 1, 8, 1>}, {transform_indices = @transform_5, window_bounds = array<i64: 1, 8, 1>}, {transform_indices = @transform_6, window_bounds = array<i64: 1, 8, 8>}, {pipeline_mode = #tpu.pipeline_mode<synchronous>, transform_indices = @transform_7, window_bounds = array<i64: 2, 32, 16>}, {pipeline_mode = #tpu.pipeline_mode<synchronous>, transform_indices = @transform_8, window_bounds = array<i64: 2, 1, 16>}, {pipeline_mode = #tpu.pipeline_mode<synchronous>, transform_indices = @transform_9, window_bounds = array<i64: 2, 32, 16>}, {pipeline_mode = #tpu.pipeline_mode<synchronous>, transform_indices = @transform_10, window_bounds = array<i64: 2, 1, 16>}, {pipeline_mode = #tpu.pipeline_mode<synchronous>, transform_indices = @transform_11, window_bounds = array<i64: 2, 32, 16>}, {pipeline_mode = #tpu.pipeline_mode<synchronous>, transform_indices = @transform_12, window_bounds = array<i64: 2, 1, 16>}, {pipeline_mode = #tpu.pipeline_mode<synchronous>, transform_indices = @transform_13, window_bounds = array<i64: 2, 16, 32>}, {pipeline_mode = #tpu.pipeline_mode<synchronous>, transform_indices = @transform_14, window_bounds = array<i64: 1, 32>}, {pipeline_mode = #tpu.pipeline_mode<synchronous>, transform_indices = @transform_15, window_bounds = array<i64: 1, 32>}, {pipeline_mode = #tpu.pipeline_mode<synchronous>, transform_indices = @transform_16, window_bounds = array<i64: 1, 32>}, {pipeline_mode = #tpu.pipeline_mode<synchronous>, transform_indices = @transform_17, window_bounds = array<i64: 32, 64>}, {pipeline_mode = #tpu.pipeline_mode<synchronous>, transform_indices = @transform_18, window_bounds = array<i64: 1, 64>}, {pipeline_mode = #tpu.pipeline_mode<synchronous>, transform_indices = @transform_19, window_bounds = array<i64: 64, 32>}, {pipeline_mode = #tpu.pipeline_mode<synchronous>, transform_indices = @transform_20, window_bounds = array<i64: 1, 32>}, {transform_indices = @transform_21, window_bounds = array<i64: 1, 8, 128>}]} {
    %c0 = arith.constant 0 : index
    %c0_0 = arith.constant 0 : index
    %c0_1 = arith.constant 0 : index
    %0 = vector.load %arg2[%c0, %c0_0, %c0_1] : memref<1x8x32xf32, #tpu.memory_space<vmem>>, vector<1x8x32xf32>
    %1 = vector.shape_cast %0 : vector<1x8x32xf32> to vector<8x32xf32>
    %c0_2 = arith.constant 0 : index
    %c0_3 = arith.constant 0 : index
    %c0_4 = arith.constant 0 : index
    %2 = vector.load %arg3[%c0_2, %c0_3, %c0_4] : memref<1x8x32xf32, #tpu.memory_space<vmem>>, vector<1x8x32xf32>
    %3 = vector.shape_cast %2 : vector<1x8x32xf32> to vector<8x32xf32>
    %c0_5 = arith.constant 0 : index
    %c0_6 = arith.constant 0 : index
    %c0_7 = arith.constant 0 : index
    %4 = vector.load %arg4[%c0_5, %c0_6, %c0_7] : memref<1x8x32xf32, #tpu.memory_space<vmem>>, vector<1x8x32xf32>
    %5 = vector.shape_cast %4 : vector<1x8x32xf32> to vector<8x32xf32>
    %c0_8 = arith.constant 0 : index
    %c0_9 = arith.constant 0 : index
    %c0_10 = arith.constant 0 : index
    %6 = vector.load %arg5[%c0_8, %c0_9, %c0_10] : memref<1x8x1xf32, #tpu.memory_space<vmem>>, vector<1x8x1xf32>
    %c0_11 = arith.constant 0 : index
    %c0_12 = arith.constant 0 : index
    %c0_13 = arith.constant 0 : index
    %7 = vector.load %arg6[%c0_11, %c0_12, %c0_13] : memref<1x8x1xf32, #tpu.memory_space<vmem>>, vector<1x8x1xf32>
    %c0_14 = arith.constant 0 : index
    %c0_15 = arith.constant 0 : index
    %c0_16 = arith.constant 0 : index
    %8 = vector.load %arg7[%c0_14, %c0_15, %c0_16] : memref<1x8x1xf32, #tpu.memory_space<vmem>>, vector<1x8x1xf32>
    %9 = vector.shape_cast %8 : vector<1x8x1xf32> to vector<8x1xf32>
    %c0_17 = arith.constant 0 : index
    %c0_18 = arith.constant 0 : index
    %c0_19 = arith.constant 0 : index
    %10 = vector.load %arg8[%c0_17, %c0_18, %c0_19] : memref<1x8x8xf32, #tpu.memory_space<vmem>>, vector<1x8x8xf32>
    %11 = arith.truncf %1 : vector<8x32xf32> to vector<8x32xbf16>
    %12 = arith.truncf %3 : vector<8x32xf32> to vector<8x32xbf16>
    %13 = arith.truncf %5 : vector<8x32xf32> to vector<8x32xbf16>
    %14 = vector.shape_cast %11 : vector<8x32xbf16> to vector<1x8x32xbf16>
    %15 = vector.broadcast %14 : vector<1x8x32xbf16> to vector<2x8x32xbf16>
    %16 = vector.shape_cast %12 : vector<8x32xbf16> to vector<1x8x32xbf16>
    %17 = vector.broadcast %16 : vector<1x8x32xbf16> to vector<2x8x32xbf16>
    %18 = vector.shape_cast %13 : vector<8x32xbf16> to vector<1x8x32xbf16>
    %19 = vector.broadcast %18 : vector<1x8x32xbf16> to vector<2x8x32xbf16>
    %c0_20 = arith.constant 0 : index
    %c0_21 = arith.constant 0 : index
    %c0_22 = arith.constant 0 : index
    %20 = vector.load %arg9[%c0_20, %c0_21, %c0_22] : memref<2x32x16xbf16, #tpu.memory_space<vmem>>, vector<2x32x16xbf16>
    %cst = arith.constant dense<0.000000e+00> : vector<2x8x16xf32>
    %21 = tpu.matmul %15, %20, %cst {dimension_numbers = #tpu.dot_dimension_numbers<[2], [1], [1], [2], [0, 0, 0, 1, 1, 2], [0], [0]>} : vector<2x8x32xbf16>, vector<2x32x16xbf16>, vector<2x8x16xf32> -> vector<2x8x16xf32>
    %c0_23 = arith.constant 0 : index
    %c0_24 = arith.constant 0 : index
    %c0_25 = arith.constant 0 : index
    %22 = vector.load %arg10[%c0_23, %c0_24, %c0_25] : memref<2x1x16xf32, #tpu.memory_space<vmem>>, vector<2x1x16xf32>
    %23 = vector.broadcast %22 : vector<2x1x16xf32> to vector<2x8x16xf32>
    %24 = arith.addf %21, %23 : vector<2x8x16xf32>
    %25 = vector.broadcast %6 : vector<1x8x1xf32> to vector<2x8x16xf32>
    %26 = arith.mulf %24, %25 : vector<2x8x16xf32>
    %c0_26 = arith.constant 0 : index
    %c0_27 = arith.constant 0 : index
    %c0_28 = arith.constant 0 : index
    %27 = vector.load %arg11[%c0_26, %c0_27, %c0_28] : memref<2x32x16xbf16, #tpu.memory_space<vmem>>, vector<2x32x16xbf16>
    %cst_29 = arith.constant dense<0.000000e+00> : vector<2x8x16xf32>
    %28 = tpu.matmul %17, %27, %cst_29 {dimension_numbers = #tpu.dot_dimension_numbers<[2], [1], [1], [2], [0, 0, 0, 1, 1, 2], [0], [0]>} : vector<2x8x32xbf16>, vector<2x32x16xbf16>, vector<2x8x16xf32> -> vector<2x8x16xf32>
    %c0_30 = arith.constant 0 : index
    %c0_31 = arith.constant 0 : index
    %c0_32 = arith.constant 0 : index
    %29 = vector.load %arg12[%c0_30, %c0_31, %c0_32] : memref<2x1x16xf32, #tpu.memory_space<vmem>>, vector<2x1x16xf32>
    %30 = vector.broadcast %29 : vector<2x1x16xf32> to vector<2x8x16xf32>
    %31 = arith.addf %28, %30 : vector<2x8x16xf32>
    %32 = vector.broadcast %7 : vector<1x8x1xf32> to vector<2x8x16xf32>
    %33 = arith.mulf %31, %32 : vector<2x8x16xf32>
    %c0_33 = arith.constant 0 : index
    %c0_34 = arith.constant 0 : index
    %c0_35 = arith.constant 0 : index
    %34 = vector.load %arg13[%c0_33, %c0_34, %c0_35] : memref<2x32x16xbf16, #tpu.memory_space<vmem>>, vector<2x32x16xbf16>
    %cst_36 = arith.constant dense<0.000000e+00> : vector<2x8x16xf32>
    %35 = tpu.matmul %19, %34, %cst_36 {dimension_numbers = #tpu.dot_dimension_numbers<[2], [1], [1], [2], [0, 0, 0, 1, 1, 2], [0], [0]>} : vector<2x8x32xbf16>, vector<2x32x16xbf16>, vector<2x8x16xf32> -> vector<2x8x16xf32>
    %c0_37 = arith.constant 0 : index
    %c0_38 = arith.constant 0 : index
    %c0_39 = arith.constant 0 : index
    %36 = vector.load %arg14[%c0_37, %c0_38, %c0_39] : memref<2x1x16xf32, #tpu.memory_space<vmem>>, vector<2x1x16xf32>
    %37 = vector.broadcast %36 : vector<2x1x16xf32> to vector<2x8x16xf32>
    %38 = arith.addf %35, %37 : vector<2x8x16xf32>
    %39 = vector.broadcast %7 : vector<1x8x1xf32> to vector<2x8x16xf32>
    %40 = arith.mulf %38, %39 : vector<2x8x16xf32>
    %cst_40 = arith.constant 2.500000e-01 : f32
    %41 = vector.broadcast %cst_40 : f32 to vector<2x8x16xf32>
    %42 = arith.mulf %26, %41 : vector<2x8x16xf32>
    %43 = arith.truncf %42 : vector<2x8x16xf32> to vector<2x8x16xbf16>
    %44 = arith.truncf %33 : vector<2x8x16xf32> to vector<2x8x16xbf16>
    %cst_41 = arith.constant dense<0.000000e+00> : vector<2x8x8xf32>
    %45 = tpu.matmul %43, %44, %cst_41 {dimension_numbers = #tpu.dot_dimension_numbers<[2], [2], [1], [1], [0, 0, 0, 1, 1, 1], [0], [0]>} : vector<2x8x16xbf16>, vector<2x8x16xbf16>, vector<2x8x8xf32> -> vector<2x8x8xf32>
    %46 = vector.broadcast %10 : vector<1x8x8xf32> to vector<2x8x8xf32>
    %47 = arith.subf %45, %46 : vector<2x8x8xf32>
    %cst_42 = arith.constant dense<0xFF800000> : vector<2x8xf32>
    %48 = vector.multi_reduction <maximumf>, %47, %cst_42 [2] : vector<2x8x8xf32> to vector<2x8xf32>
    %49 = vector.shape_cast %48 : vector<2x8xf32> to vector<2x8x1xf32>
    %50 = vector.broadcast %49 : vector<2x8x1xf32> to vector<2x8x8xf32>
    %51 = arith.subf %47, %50 : vector<2x8x8xf32>
    %52 = math.exp %51 : vector<2x8x8xf32>
    %cst_43 = arith.constant dense<0.000000e+00> : vector<2x8xf32>
    %53 = vector.multi_reduction <add>, %52, %cst_43 [2] : vector<2x8x8xf32> to vector<2x8xf32>
    %54 = vector.shape_cast %53 : vector<2x8xf32> to vector<2x8x1xf32>
    %55 = tpu.reciprocal %54 {approx = true} : vector<2x8x1xf32> -> vector<2x8x1xf32>
    %56 = vector.broadcast %55 : vector<2x8x1xf32> to vector<2x8x8xf32>
    %57 = arith.mulf %52, %56 : vector<2x8x8xf32>
    %58 = arith.truncf %57 : vector<2x8x8xf32> to vector<2x8x8xbf16>
    %59 = arith.truncf %40 : vector<2x8x16xf32> to vector<2x8x16xbf16>
    %cst_44 = arith.constant dense<0.000000e+00> : vector<2x8x16xf32>
    %60 = tpu.matmul %58, %59, %cst_44 {dimension_numbers = #tpu.dot_dimension_numbers<[2], [1], [1], [2], [0, 0, 0, 1, 1, 2], [0], [0]>} : vector<2x8x8xbf16>, vector<2x8x16xbf16>, vector<2x8x16xf32> -> vector<2x8x16xf32>
    %61 = arith.truncf %60 : vector<2x8x16xf32> to vector<2x8x16xbf16>
    %c0_45 = arith.constant 0 : index
    %c0_46 = arith.constant 0 : index
    %c0_47 = arith.constant 0 : index
    %62 = vector.load %arg15[%c0_45, %c0_46, %c0_47] : memref<2x16x32xbf16, #tpu.memory_space<vmem>>, vector<2x16x32xbf16>
    %cst_48 = arith.constant dense<0.000000e+00> : vector<2x8x32xf32>
    %63 = tpu.matmul %61, %62, %cst_48 {dimension_numbers = #tpu.dot_dimension_numbers<[2], [1], [1], [2], [0, 0, 0, 1, 1, 2], [0], [0]>} : vector<2x8x16xbf16>, vector<2x16x32xbf16>, vector<2x8x32xf32> -> vector<2x8x32xf32>
    %cst_49 = arith.constant dense<0.000000e+00> : vector<8x32xf32>
    %64 = vector.multi_reduction <add>, %63, %cst_49 [0] : vector<2x8x32xf32> to vector<8x32xf32>
    %c0_50 = arith.constant 0 : index
    %c0_51 = arith.constant 0 : index
    %65 = vector.load %arg16[%c0_50, %c0_51] : memref<1x32xf32, #tpu.memory_space<vmem>>, vector<1x32xf32>
    %66 = vector.broadcast %65 : vector<1x32xf32> to vector<8x32xf32>
    %67 = arith.addf %64, %66 : vector<8x32xf32>
    %68 = vector.broadcast %9 : vector<8x1xf32> to vector<8x32xf32>
    %69 = arith.mulf %67, %68 : vector<8x32xf32>
    %c0_52 = arith.constant 0 : index
    %c0_53 = arith.constant 0 : index
    %70 = vector.load %arg17[%c0_52, %c0_53] : memref<1x32xf32, #tpu.memory_space<vmem>>, vector<1x32xf32>
    %c0_54 = arith.constant 0 : index
    %c0_55 = arith.constant 0 : index
    %71 = vector.load %arg18[%c0_54, %c0_55] : memref<1x32xf32, #tpu.memory_space<vmem>>, vector<1x32xf32>
    %72 = arith.addf %69, %1 : vector<8x32xf32>
    %cst_56 = arith.constant dense<0.000000e+00> : vector<8xf32>
    %73 = vector.multi_reduction <add>, %72, %cst_56 [1] : vector<8x32xf32> to vector<8xf32>
    %74 = vector.shape_cast %73 : vector<8xf32> to vector<8x1xf32>
    %cst_57 = arith.constant 3.200000e+01 : f32
    %75 = vector.broadcast %cst_57 : f32 to vector<8x1xf32>
    %76 = arith.divf %74, %75 : vector<8x1xf32>
    %77 = vector.broadcast %76 : vector<8x1xf32> to vector<8x32xf32>
    %78 = arith.subf %72, %77 : vector<8x32xf32>
    %79 = arith.mulf %78, %78 : vector<8x32xf32>
    %cst_58 = arith.constant dense<0.000000e+00> : vector<8xf32>
    %80 = vector.multi_reduction <add>, %79, %cst_58 [1] : vector<8x32xf32> to vector<8xf32>
    %81 = vector.shape_cast %80 : vector<8xf32> to vector<8x1xf32>
    %cst_59 = arith.constant 3.200000e+01 : f32
    %82 = vector.broadcast %cst_59 : f32 to vector<8x1xf32>
    %83 = arith.divf %81, %82 : vector<8x1xf32>
    %84 = vector.broadcast %76 : vector<8x1xf32> to vector<8x32xf32>
    %85 = arith.subf %72, %84 : vector<8x32xf32>
    %cst_60 = arith.constant 9.99999974E-6 : f32
    %86 = vector.broadcast %cst_60 : f32 to vector<8x1xf32>
    %87 = arith.addf %83, %86 : vector<8x1xf32>
    %88 = math.rsqrt %87 : vector<8x1xf32>
    %89 = vector.broadcast %88 : vector<8x1xf32> to vector<8x32xf32>
    %90 = arith.mulf %85, %89 : vector<8x32xf32>
    %91 = vector.broadcast %70 : vector<1x32xf32> to vector<8x32xf32>
    %92 = arith.mulf %90, %91 : vector<8x32xf32>
    %93 = vector.broadcast %71 : vector<1x32xf32> to vector<8x32xf32>
    %94 = arith.addf %92, %93 : vector<8x32xf32>
    %95 = arith.truncf %94 : vector<8x32xf32> to vector<8x32xbf16>
    %c0_61 = arith.constant 0 : index
    %c0_62 = arith.constant 0 : index
    %96 = vector.load %arg19[%c0_61, %c0_62] : memref<32x64xbf16, #tpu.memory_space<vmem>>, vector<32x64xbf16>
    %cst_63 = arith.constant dense<0.000000e+00> : vector<8x64xf32>
    %97 = tpu.matmul %95, %96, %cst_63 {dimension_numbers = #tpu.dot_dimension_numbers<[1], [0], [0], [1], [0, 0, 1, 1], [], []>} : vector<8x32xbf16>, vector<32x64xbf16>, vector<8x64xf32> -> vector<8x64xf32>
    %c0_64 = arith.constant 0 : index
    %c0_65 = arith.constant 0 : index
    %98 = vector.load %arg20[%c0_64, %c0_65] : memref<1x64xf32, #tpu.memory_space<vmem>>, vector<1x64xf32>
    %99 = vector.broadcast %98 : vector<1x64xf32> to vector<8x64xf32>
    %100 = arith.addf %97, %99 : vector<8x64xf32>
    %cst_66 = arith.constant 5.000000e-01 : f32
    %101 = vector.broadcast %cst_66 : f32 to vector<8x64xf32>
    %102 = arith.mulf %101, %100 : vector<8x64xf32>
    %103 = arith.mulf %100, %100 : vector<8x64xf32>
    %104 = arith.mulf %100, %103 : vector<8x64xf32>
    %cst_67 = arith.constant 4.471500e-02 : f32
    %105 = vector.broadcast %cst_67 : f32 to vector<8x64xf32>
    %106 = arith.mulf %105, %104 : vector<8x64xf32>
    %107 = arith.addf %100, %106 : vector<8x64xf32>
    %cst_68 = arith.constant 0.797884583 : f32
    %108 = vector.broadcast %cst_68 : f32 to vector<8x64xf32>
    %109 = arith.mulf %108, %107 : vector<8x64xf32>
    %110 = math.tanh %109 : vector<8x64xf32>
    %cst_69 = arith.constant 1.000000e+00 : f32
    %111 = vector.broadcast %cst_69 : f32 to vector<8x64xf32>
    %112 = arith.addf %111, %110 : vector<8x64xf32>
    %113 = arith.mulf %102, %112 : vector<8x64xf32>
    %114 = arith.truncf %113 : vector<8x64xf32> to vector<8x64xbf16>
    %c0_70 = arith.constant 0 : index
    %c0_71 = arith.constant 0 : index
    %115 = vector.load %arg21[%c0_70, %c0_71] : memref<64x32xbf16, #tpu.memory_space<vmem>>, vector<64x32xbf16>
    %cst_72 = arith.constant dense<0.000000e+00> : vector<8x32xf32>
    %116 = tpu.matmul %114, %115, %cst_72 {dimension_numbers = #tpu.dot_dimension_numbers<[1], [0], [0], [1], [0, 0, 1, 1], [], []>} : vector<8x64xbf16>, vector<64x32xbf16>, vector<8x32xf32> -> vector<8x32xf32>
    %c0_73 = arith.constant 0 : index
    %c0_74 = arith.constant 0 : index
    %117 = vector.load %arg22[%c0_73, %c0_74] : memref<1x32xf32, #tpu.memory_space<vmem>>, vector<1x32xf32>
    %118 = vector.broadcast %117 : vector<1x32xf32> to vector<8x32xf32>
    %119 = arith.addf %116, %118 : vector<8x32xf32>
    %120 = arith.addf %119, %94 : vector<8x32xf32>
    %cst_75 = arith.constant dense<0.000000e+00> : vector<8xf32>
    %121 = vector.multi_reduction <add>, %120, %cst_75 [1] : vector<8x32xf32> to vector<8xf32>
    %122 = vector.shape_cast %121 : vector<8xf32> to vector<8x1xf32>
    %cst_76 = arith.constant 3.200000e+01 : f32
    %123 = vector.broadcast %cst_76 : f32 to vector<8x1xf32>
    %124 = arith.divf %122, %123 : vector<8x1xf32>
    %125 = vector.broadcast %124 : vector<8x1xf32> to vector<8x32xf32>
    %126 = arith.subf %120, %125 : vector<8x32xf32>
    %127 = arith.mulf %126, %126 : vector<8x32xf32>
    %cst_77 = arith.constant dense<0.000000e+00> : vector<8xf32>
    %128 = vector.multi_reduction <add>, %127, %cst_77 [1] : vector<8x32xf32> to vector<8xf32>
    %129 = vector.shape_cast %128 : vector<8xf32> to vector<8x1xf32>
    %cst_78 = arith.constant 3.200000e+01 : f32
    %130 = vector.broadcast %cst_78 : f32 to vector<8x1xf32>
    %131 = arith.divf %129, %130 : vector<8x1xf32>
    %132 = vector.broadcast %124 : vector<8x1xf32> to vector<8x32xf32>
    %133 = arith.subf %120, %132 : vector<8x32xf32>
    %cst_79 = arith.constant 9.99999974E-6 : f32
    %134 = vector.broadcast %cst_79 : f32 to vector<8x1xf32>
    %135 = arith.addf %131, %134 : vector<8x1xf32>
    %136 = math.rsqrt %135 : vector<8x1xf32>
    %137 = vector.broadcast %136 : vector<8x1xf32> to vector<8x32xf32>
    %138 = arith.mulf %133, %137 : vector<8x32xf32>
    %139 = vector.broadcast %70 : vector<1x32xf32> to vector<8x32xf32>
    %140 = arith.mulf %138, %139 : vector<8x32xf32>
    %141 = vector.broadcast %71 : vector<1x32xf32> to vector<8x32xf32>
    %142 = arith.addf %140, %141 : vector<8x32xf32>
    %cst_80 = arith.constant 0.000000e+00 : f32
    %143 = vector.broadcast %cst_80 : f32 to vector<8x96xf32>
    %144 = tpu.concatenate %142, %143 in 1 : vector<8x32xf32>, vector<8x96xf32> -> vector<8x128xf32>
    %c0_81 = arith.constant 0 : index
    %c0_82 = arith.constant 0 : index
    %c0_83 = arith.constant 0 : index
    %145 = vector.load %arg23[%c0_81, %c0_82, %c0_83] : memref<1x8x128xf32, #tpu.memory_space<vmem>>, vector<1x8x128xf32>
    %146 = vector.shape_cast %145 : vector<1x8x128xf32> to vector<8x128xf32>
    %147 = vector.shape_cast %144 : vector<8x128xf32> to vector<1x8x128xf32>
    tpu.vector_store %arg23[%c0_81, %c0_82, %c0_83], %147 {strides = array<i32>} : memref<1x8x128xf32, #tpu.memory_space<vmem>>, vector<1x8x128xf32>,
    return
  }
  func.func @transform_0(%arg0: i32, %arg1: i32) -> (i32, i32, i32) {
    %c0_i32 = arith.constant 0 : i32
    %c0_i32_0 = arith.constant 0 : i32
    return %arg0, %arg1, %c0_i32 : i32, i32, i32
  }
  func.func @transform_1(%arg0: i32, %arg1: i32) -> (i32, i32, i32) {
    %c0_i32 = arith.constant 0 : i32
    %c0_i32_0 = arith.constant 0 : i32
    %c0_i32_1 = arith.constant 0 : i32
    return %arg0, %c0_i32, %c0_i32_0 : i32, i32, i32
  }
  func.func @transform_2(%arg0: i32, %arg1: i32) -> (i32, i32, i32) {
    %c0_i32 = arith.constant 0 : i32
    %c0_i32_0 = arith.constant 0 : i32
    %c0_i32_1 = arith.constant 0 : i32
    return %arg0, %c0_i32, %c0_i32_0 : i32, i32, i32
  }
  func.func @transform_3(%arg0: i32, %arg1: i32) -> (i32, i32, i32) {
    %c0_i32 = arith.constant 0 : i32
    %c0_i32_0 = arith.constant 0 : i32
    return %arg0, %arg1, %c0_i32 : i32, i32, i32
  }
  func.func @transform_4(%arg0: i32, %arg1: i32) -> (i32, i32, i32) {
    %c0_i32 = arith.constant 0 : i32
    %c0_i32_0 = arith.constant 0 : i32
    %c0_i32_1 = arith.constant 0 : i32
    return %arg0, %c0_i32, %c0_i32_0 : i32, i32, i32
  }
  func.func @transform_5(%arg0: i32, %arg1: i32) -> (i32, i32, i32) {
    %c0_i32 = arith.constant 0 : i32
    %c0_i32_0 = arith.constant 0 : i32
    return %arg0, %arg1, %c0_i32 : i32, i32, i32
  }
  func.func @transform_6(%arg0: i32, %arg1: i32) -> (i32, i32, i32) {
    %c0_i32 = arith.constant 0 : i32
    %c0_i32_0 = arith.constant 0 : i32
    return %arg0, %arg1, %c0_i32 : i32, i32, i32
  }
  func.func @transform_7(%arg0: i32, %arg1: i32) -> (i32, i32, i32) {
    %c0_i32 = arith.constant 0 : i32
    %c0_i32_0 = arith.constant 0 : i32
    %c0_i32_1 = arith.constant 0 : i32
    %c0_i32_2 = arith.constant 0 : i32
    return %c0_i32, %c0_i32_0, %c0_i32_1 : i32, i32, i32
  }
  func.func @transform_8(%arg0: i32, %arg1: i32) -> (i32, i32, i32) {
    %c0_i32 = arith.constant 0 : i32
    %c0_i32_0 = arith.constant 0 : i32
    %c0_i32_1 = arith.constant 0 : i32
    %c0_i32_2 = arith.constant 0 : i32
    return %c0_i32, %c0_i32_0, %c0_i32_1 : i32, i32, i32
  }
  func.func @transform_9(%arg0: i32, %arg1: i32) -> (i32, i32, i32) {
    %c0_i32 = arith.constant 0 : i32
    %c0_i32_0 = arith.constant 0 : i32
    %c0_i32_1 = arith.constant 0 : i32
    %c0_i32_2 = arith.constant 0 : i32
    return %c0_i32, %c0_i32_0, %c0_i32_1 : i32, i32, i32
  }
  func.func @transform_10(%arg0: i32, %arg1: i32) -> (i32, i32, i32) {
    %c0_i32 = arith.constant 0 : i32
    %c0_i32_0 = arith.constant 0 : i32
    %c0_i32_1 = arith.constant 0 : i32
    %c0_i32_2 = arith.constant 0 : i32
    return %c0_i32, %c0_i32_0, %c0_i32_1 : i32, i32, i32
  }
  func.func @transform_11(%arg0: i32, %arg1: i32) -> (i32, i32, i32) {
    %c0_i32 = arith.constant 0 : i32
    %c0_i32_0 = arith.constant 0 : i32
    %c0_i32_1 = arith.constant 0 : i32
    %c0_i32_2 = arith.constant 0 : i32
    return %c0_i32, %c0_i32_0, %c0_i32_1 : i32, i32, i32
  }
  func.func @transform_12(%arg0: i32, %arg1: i32) -> (i32, i32, i32) {
    %c0_i32 = arith.constant 0 : i32
    %c0_i32_0 = arith.constant 0 : i32
    %c0_i32_1 = arith.constant 0 : i32
    %c0_i32_2 = arith.constant 0 : i32
    return %c0_i32, %c0_i32_0, %c0_i32_1 : i32, i32, i32
  }
  func.func @transform_13(%arg0: i32, %arg1: i32) -> (i32, i32, i32) {
    %c0_i32 = arith.constant 0 : i32
    %c0_i32_0 = arith.constant 0 : i32
    %c0_i32_1 = arith.constant 0 : i32
    %c0_i32_2 = arith.constant 0 : i32
    return %c0_i32, %c0_i32_0, %c0_i32_1 : i32, i32, i32
  }
  func.func @transform_14(%arg0: i32, %arg1: i32) -> (i32, i32) {
    %c0_i32 = arith.constant 0 : i32
    %c0_i32_0 = arith.constant 0 : i32
    %c0_i32_1 = arith.constant 0 : i32
    return %c0_i32, %c0_i32_0 : i32, i32
  }
  func.func @transform_15(%arg0: i32, %arg1: i32) -> (i32, i32) {
    %c0_i32 = arith.constant 0 : i32
    %c0_i32_0 = arith.constant 0 : i32
    %c0_i32_1 = arith.constant 0 : i32
    return %c0_i32, %c0_i32_0 : i32, i32
  }
  func.func @transform_16(%arg0: i32, %arg1: i32) -> (i32, i32) {
    %c0_i32 = arith.constant 0 : i32
    %c0_i32_0 = arith.constant 0 : i32
    %c0_i32_1 = arith.constant 0 : i32
    return %c0_i32, %c0_i32_0 : i32, i32
  }
  func.func @transform_17(%arg0: i32, %arg1: i32) -> (i32, i32) {
    %c0_i32 = arith.constant 0 : i32
    %c0_i32_0 = arith.constant 0 : i32
    %c0_i32_1 = arith.constant 0 : i32
    return %c0_i32, %c0_i32_0 : i32, i32
  }
  func.func @transform_18(%arg0: i32, %arg1: i32) -> (i32, i32) {
    %c0_i32 = arith.constant 0 : i32
    %c0_i32_0 = arith.constant 0 : i32
    %c0_i32_1 = arith.constant 0 : i32
    return %c0_i32, %c0_i32_0 : i32, i32
  }
  func.func @transform_19(%arg0: i32, %arg1: i32) -> (i32, i32) {
    %c0_i32 = arith.constant 0 : i32
    %c0_i32_0 = arith.constant 0 : i32
    %c0_i32_1 = arith.constant 0 : i32
    return %c0_i32, %c0_i32_0 : i32, i32
  }
  func.func @transform_20(%arg0: i32, %arg1: i32) -> (i32, i32) {
    %c0_i32 = arith.constant 0 : i32
    %c0_i32_0 = arith.constant 0 : i32
    %c0_i32_1 = arith.constant 0 : i32
    return %c0_i32, %c0_i32_0 : i32, i32
  }
  func.func @transform_21(%arg0: i32, %arg1: i32) -> (i32, i32, i32) {
    %c0_i32 = arith.constant 0 : i32
    %c0_i32_0 = arith.constant 0 : i32
    return %arg0, %arg1, %c0_i32 : i32, i32, i32
  }
}

</mosaic_0001>

<llo_original>
// kernel: tpu_custom_call.1
$region0: #{tpu_custom_call.1}
  #allocation0 [shape = 'u32[]', space=smem, size = 0x4, offset = 0x4, fixed_abs, tag = 'smem constant byte address 0x4 - core index']
  #allocation1 [shape = 'u32[144,128]{1,0:T(1,128)}', space=vmem, size = 0x12000, scoped, tag = 'internal scratch']
  %s0 = inlined_call_operand.vmem [shape: f32[2,8,32], index: 0, kind: input, shape index: {}]
  %s1 = inlined_call_operand.vmem [shape: f32[2,8,32], index: 1, kind: input, shape index: {}]
  %s2 = inlined_call_operand.vmem [shape: f32[2,8,32], index: 2, kind: input, shape index: {}]
  %s3 = inlined_call_operand.vmem [shape: f32[2,8,1], index: 3, kind: input, shape index: {}]
  %s4 = inlined_call_operand.vmem [shape: f32[2,8,1], index: 4, kind: input, shape index: {}]
  %s5 = inlined_call_operand.vmem [shape: f32[2,8,1], index: 5, kind: input, shape index: {}]
  %s6 = inlined_call_operand.vmem [shape: f32[2,8,8], index: 6, kind: input, shape index: {}]
  %s7 = inlined_call_operand.vmem [shape: bf16[2,32,16], index: 7, kind: input, shape index: {}]
  %s8 = inlined_call_operand.vmem [shape: f32[2,1,16], index: 8, kind: input, shape index: {}]
  %s9 = inlined_call_operand.vmem [shape: bf16[2,32,16], index: 9, kind: input, shape index: {}]
  %s10 = inlined_call_operand.vmem [shape: f32[2,1,16], index: 10, kind: input, shape index: {}]
  %s11 = inlined_call_operand.vmem [shape: bf16[2,32,16], index: 11, kind: input, shape index: {}]
  %s12 = inlined_call_operand.vmem [shape: f32[2,1,16], index: 12, kind: input, shape index: {}]
  %s13 = inlined_call_operand.vmem [shape: bf16[2,16,32], index: 13, kind: input, shape index: {}]
  %s14 = inlined_call_operand.vmem [shape: f32[1,32], index: 14, kind: input, shape index: {}]
  %s15 = inlined_call_operand.vmem [shape: f32[1,32], index: 15, kind: input, shape index: {}]
  %s16 = inlined_call_operand.vmem [shape: f32[1,32], index: 16, kind: input, shape index: {}]
  %s17 = inlined_call_operand.vmem [shape: bf16[32,64], index: 17, kind: input, shape index: {}]
  %s18 = inlined_call_operand.vmem [shape: f32[1,64], index: 18, kind: input, shape index: {}]
  %s19 = inlined_call_operand.vmem [shape: bf16[64,32], index: 19, kind: input, shape index: {}]
  %s20 = inlined_call_operand.vmem [shape: f32[1,32], index: 20, kind: input, shape index: {}]
  %s21 = inlined_call_operand.hbm [shape: f32[2,8,128], index: 21, kind: output, shape index: {}]
  %s22 = sld [smem:[#allocation0]]
  $region117: #{tpu_custom_call.1} parent=0
    _
  %s24 = ssub.s32 1, %s22
  %s25 = scalar_select 0, %s24, %s22
  $region1: #{tpu_custom_call.1} parent=0
    #allocation2 [shape = 'u8[8192]{0}', space=vmem, size = 0x2000, scoped, tag = 'output window, operand 0']
    #allocation3 [shape = 's32[2]{0}', space=sflag, size = 0x8, scoped, tag = 'scoped memory for tpu_custom_call.1']
    %26 = vsyncpa [#allocation3], 0
    %s27 = scalar_lea.sflag [#allocation3], 1
    %28 = vsyncpa %s27, 0
    loop: start=0, step=1, limit=4
    $region2: #{tpu_custom_call.1} parent=1 // loop_pre_header
      _
    $region3: #{tpu_custom_call.1} parent=1 // loop_header
      %s30 = sphi 0, %s34
      %p31 = scmp.ge.s32.totalorder %s30, 4
      %s37 = sphi 0, %s49
      %s38 = sphi 0, %s45
      %s39 = sphi 0, %s37
      %s40 = sphi 0, %s38
      %s41 = sphi 0, %s39
      %s42 = sphi 0, %s40
      %s54 = sphi 0, %s56
      %s57 = sphi 0, %s54
      %s58 = sphi 0, %s57
      %s74 = sphi 0, %s58
      %s80 = sphi 0, %s82
      %s83 = sphi 0, %s80
      %s84 = sphi 0, %s83
      %s100 = sphi 0, %s84
      %s106 = sphi 0, %s108
      %s109 = sphi 0, %s106
      %s110 = sphi 0, %s109
      %s126 = sphi 0, %s110
      %s134 = sphi 0, %s136
      %s137 = sphi 0, %s134
      %s138 = sphi 0, %s137
      %s154 = sphi 0, %s138
      %s160 = sphi 0, %s162
      %s163 = sphi 0, %s160
      %s164 = sphi 0, %s163
      %s180 = sphi 0, %s164
      %s188 = sphi 0, %s190
      %s191 = sphi 0, %s188
      %s192 = sphi 0, %s191
      %s208 = sphi 0, %s192
      %s216 = sphi 0, %s218
      %s219 = sphi 0, %s216
      %s220 = sphi 0, %s219
      %s236 = sphi 0, %s220
      %s240 = sphi 0, %s240
      %s242 = sphi 0, %s240
      %s243 = sphi 0, %s242
      %s257 = sphi 0, %s243
      %s261 = sphi 0, %s261
      %s263 = sphi 0, %s261
      %s264 = sphi 0, %s263
      %s278 = sphi 0, %s264
      %s282 = sphi 0, %s282
      %s284 = sphi 0, %s282
      %s285 = sphi 0, %s284
      %s299 = sphi 0, %s285
      %s303 = sphi 0, %s303
      %s305 = sphi 0, %s303
      %s306 = sphi 0, %s305
      %s320 = sphi 0, %s306
      %s324 = sphi 0, %s324
      %s326 = sphi 0, %s324
      %s327 = sphi 0, %s326
      %s341 = sphi 0, %s327
      %s345 = sphi 0, %s345
      %s347 = sphi 0, %s345
      %s348 = sphi 0, %s347
      %s362 = sphi 0, %s348
      %s366 = sphi 0, %s366
      %s368 = sphi 0, %s366
      %s369 = sphi 0, %s368
      %s383 = sphi 0, %s369
      %s387 = sphi 0, %s387
      %s389 = sphi 0, %s387
      %s390 = sphi 0, %s389
      %s404 = sphi 0, %s390
      %s408 = sphi 0, %s408
      %s410 = sphi 0, %s408
      %s411 = sphi 0, %s410
      %s425 = sphi 0, %s411
      %s429 = sphi 0, %s429
      %s431 = sphi 0, %s429
      %s432 = sphi 0, %s431
      %s446 = sphi 0, %s432
      %s450 = sphi 0, %s450
      %s452 = sphi 0, %s450
      %s453 = sphi 0, %s452
      %s467 = sphi 0, %s453
      %s471 = sphi 0, %s471
      %s473 = sphi 0, %s471
      %s474 = sphi 0, %s473
      %s488 = sphi 0, %s474
      %s492 = sphi 0, %s492
      %s494 = sphi 0, %s492
      %s495 = sphi 0, %s494
      %s509 = sphi 0, %s495
      %s513 = sphi 0, %s513
      %s515 = sphi 0, %s513
      %s516 = sphi 0, %s515
      %s530 = sphi 0, %s516
      %s538 = sphi 0, %s540
      %s541 = sphi 0, %s538
      %s542 = sphi 0, %s541
      %s558 = sphi 0, %s542
    $region4: #{tpu_custom_call.1} parent=1 // loop_header_branch
      %33 = sbr.rel (%p31) target = $region8
    $region5: #{tpu_custom_call.1} parent=1 // loop_body
      %s35 = ssub.s32 %s30, 1
      %s36 = ssub.s32 %s30, 2
      %s43 = sadd.s32 1, %s38
      %p44 = scmp.ge.s32.totalorder %s43, 1
      %s45 = scalar_select %p44, 0, %s43
      %s46 = sadd.s32 1, %s37
      %s47 = scalar_select %p44, %s46, %s37
      %p48 = scmp.ge.s32.totalorder %s47, 2
      %s49 = scalar_select %p48, 0, %s47
      %s50 = ssub.s32 %s37, %s49
      %s51 = ssub.s32 %s38, %s45
      %s52 = sor.u32 %s50, %s51
      %p53 = scmp.eq.s32.totalorder %s52, 0
      %s55 = sadd.s32 %s54, 1
      %s56 = scalar_select %p53, %s54, %s55
      %p59 = pneg %p53
      %p60 = scmp.eq.s32.totalorder %s30, 1
      %p61 = por %p59, %p60
      %p62 = scmp.ne.s32.totalorder %s54, %s57
      %p63 = scmp.eq.s32.totalorder %s30, 0
      %p64 = por %p62, %p63
      %p65 = scmp.ne.s32.totalorder %s54, %s57
      %p66 = scmp.eq.s32.totalorder %s35, 1
      %p67 = por %p65, %p66
      %p68 = scmp.ne.s32.totalorder %s57, %s58
      %p69 = scmp.eq.s32.totalorder %s35, 0
      %p70 = por %p68, %p69
      %p71 = scmp.ne.s32.totalorder %s57, %s58
      %p72 = scmp.eq.s32.totalorder %s36, 1
      %p73 = por %p71, %p72
      %p75 = scmp.ne.s32.totalorder %s58, %s74
      %p76 = scmp.eq.s32.totalorder %s36, 0
      %p77 = por %p75, %p76
      %s78 = ssub.s32 %s37, %s49
      %p79 = scmp.eq.s32.totalorder %s78, 0
      %s81 = sadd.s32 %s80, 1
      %s82 = scalar_select %p79, %s80, %s81
      %p85 = pneg %p79
      %p86 = scmp.eq.s32.totalorder %s30, 1
      %p87 = por %p85, %p86
      %p88 = scmp.ne.s32.totalorder %s80, %s83
      %p89 = scmp.eq.s32.totalorder %s30, 0
      %p90 = por %p88, %p89
      %p91 = scmp.ne.s32.totalorder %s80, %s83
      %p92 = scmp.eq.s32.totalorder %s35, 1
      %p93 = por %p91, %p92
      %p94 = scmp.ne.s32.totalorder %s83, %s84
      %p95 = scmp.eq.s32.totalorder %s35, 0
      %p96 = por %p94, %p95
      %p97 = scmp.ne.s32.totalorder %s83, %s84
      %p98 = scmp.eq.s32.totalorder %s36, 1
      %p99 = por %p97, %p98
      %p101 = scmp.ne.s32.totalorder %s84, %s100
      %p102 = scmp.eq.s32.totalorder %s36, 0
      %p103 = por %p101, %p102
      %s104 = ssub.s32 %s37, %s49
      %p105 = scmp.eq.s32.totalorder %s104, 0
      %s107 = sadd.s32 %s106, 1
      %s108 = scalar_select %p105, %s106, %s107
      %p111 = pneg %p105
      %p112 = scmp.eq.s32.totalorder %s30, 1
      %p113 = por %p111, %p112
      %p114 = scmp.ne.s32.totalorder %s106, %s109
      %p115 = scmp.eq.s32.totalorder %s30, 0
      %p116 = por %p114, %p115
      %p117 = scmp.ne.s32.totalorder %s106, %s109
      %p118 = scmp.eq.s32.totalorder %s35, 1
      %p119 = por %p117, %p118
      %p120 = scmp.ne.s32.totalorder %s109, %s110
      %p121 = scmp.eq.s32.totalorder %s35, 0
      %p122 = por %p120, %p121
      %p123 = scmp.ne.s32.totalorder %s109, %s110
      %p124 = scmp.eq.s32.totalorder %s36, 1
      %p125 = por %p123, %p124
      %p127 = scmp.ne.s32.totalorder %s110, %s126
      %p128 = scmp.eq.s32.totalorder %s36, 0
      %p129 = por %p127, %p128
      %s130 = ssub.s32 %s37, %s49
      %s131 = ssub.s32 %s38, %s45
      %s132 = sor.u32 %s130, %s131
      %p133 = scmp.eq.s32.totalorder %s132, 0
      %s135 = sadd.s32 %s134, 1
      %s136 = scalar_select %p133, %s134, %s135
      %p139 = pneg %p133
      %p140 = scmp.eq.s32.totalorder %s30, 1
      %p141 = por %p139, %p140
      %p142 = scmp.ne.s32.totalorder %s134, %s137
      %p143 = scmp.eq.s32.totalorder %s30, 0
      %p144 = por %p142, %p143
      %p145 = scmp.ne.s32.totalorder %s134, %s137
      %p146 = scmp.eq.s32.totalorder %s35, 1
      %p147 = por %p145, %p146
      %p148 = scmp.ne.s32.totalorder %s137, %s138
      %p149 = scmp.eq.s32.totalorder %s35, 0
      %p150 = por %p148, %p149
      %p151 = scmp.ne.s32.totalorder %s137, %s138
      %p152 = scmp.eq.s32.totalorder %s36, 1
      %p153 = por %p151, %p152
      %p155 = scmp.ne.s32.totalorder %s138, %s154
      %p156 = scmp.eq.s32.totalorder %s36, 0
      %p157 = por %p155, %p156
      %s158 = ssub.s32 %s37, %s49
      %p159 = scmp.eq.s32.totalorder %s158, 0
      %s161 = sadd.s32 %s160, 1
      %s162 = scalar_select %p159, %s160, %s161
      %p165 = pneg %p159
      %p166 = scmp.eq.s32.totalorder %s30, 1
      %p167 = por %p165, %p166
      %p168 = scmp.ne.s32.totalorder %s160, %s163
      %p169 = scmp.eq.s32.totalorder %s30, 0
      %p170 = por %p168, %p169
      %p171 = scmp.ne.s32.totalorder %s160, %s163
      %p172 = scmp.eq.s32.totalorder %s35, 1
      %p173 = por %p171, %p172
      %p174 = scmp.ne.s32.totalorder %s163, %s164
      %p175 = scmp.eq.s32.totalorder %s35, 0
      %p176 = por %p174, %p175
      %p177 = scmp.ne.s32.totalorder %s163, %s164
      %p178 = scmp.eq.s32.totalorder %s36, 1
      %p179 = por %p177, %p178
      %p181 = scmp.ne.s32.totalorder %s164, %s180
      %p182 = scmp.eq.s32.totalorder %s36, 0
      %p183 = por %p181, %p182
      %s184 = ssub.s32 %s37, %s49
      %s185 = ssub.s32 %s38, %s45
      %s186 = sor.u32 %s184, %s185
      %p187 = scmp.eq.s32.totalorder %s186, 0
      %s189 = sadd.s32 %s188, 1
      %s190 = scalar_select %p187, %s188, %s189
      %p193 = pneg %p187
      %p194 = scmp.eq.s32.totalorder %s30, 1
      %p195 = por %p193, %p194
      %p196 = scmp.ne.s32.totalorder %s188, %s191
      %p197 = scmp.eq.s32.totalorder %s30, 0
      %p198 = por %p196, %p197
      %p199 = scmp.ne.s32.totalorder %s188, %s191
      %p200 = scmp.eq.s32.totalorder %s35, 1
      %p201 = por %p199, %p200
      %p202 = scmp.ne.s32.totalorder %s191, %s192
      %p203 = scmp.eq.s32.totalorder %s35, 0
      %p204 = por %p202, %p203
      %p205 = scmp.ne.s32.totalorder %s191, %s192
      %p206 = scmp.eq.s32.totalorder %s36, 1
      %p207 = por %p205, %p206
      %p209 = scmp.ne.s32.totalorder %s192, %s208
      %p210 = scmp.eq.s32.totalorder %s36, 0
      %p211 = por %p209, %p210
      %s212 = ssub.s32 %s37, %s49
      %s213 = ssub.s32 %s38, %s45
      %s214 = sor.u32 %s212, %s213
      %p215 = scmp.eq.s32.totalorder %s214, 0
      %s217 = sadd.s32 %s216, 1
      %s218 = scalar_select %p215, %s216, %s217
      %p221 = pneg %p215
      %p222 = scmp.eq.s32.totalorder %s30, 1
      %p223 = por %p221, %p222
      %p224 = scmp.ne.s32.totalorder %s216, %s219
      %p225 = scmp.eq.s32.totalorder %s30, 0
      %p226 = por %p224, %p225
      %p227 = scmp.ne.s32.totalorder %s216, %s219
      %p228 = scmp.eq.s32.totalorder %s35, 1
      %p229 = por %p227, %p228
      %p230 = scmp.ne.s32.totalorder %s219, %s220
      %p231 = scmp.eq.s32.totalorder %s35, 0
      %p232 = por %p230, %p231
      %p233 = scmp.ne.s32.totalorder %s219, %s220
      %p234 = scmp.eq.s32.totalorder %s36, 1
      %p235 = por %p233, %p234
      %p237 = scmp.ne.s32.totalorder %s220, %s236
      %p238 = scmp.eq.s32.totalorder %s36, 0
      %p239 = por %p237, %p238
      %s241 = sadd.s32 %s240, 1
      %p244 = scmp.eq.s32.totalorder %s30, 1
      %p245 = scmp.ne.s32.totalorder %s240, %s242
      %p246 = scmp.eq.s32.totalorder %s30, 0
      %p247 = por %p245, %p246
      %p248 = scmp.ne.s32.totalorder %s240, %s242
      %p249 = scmp.eq.s32.totalorder %s35, 1
      %p250 = por %p248, %p249
      %p251 = scmp.ne.s32.totalorder %s242, %s243
      %p252 = scmp.eq.s32.totalorder %s35, 0
      %p253 = por %p251, %p252
      %p254 = scmp.ne.s32.totalorder %s242, %s243
      %p255 = scmp.eq.s32.totalorder %s36, 1
      %p256 = por %p254, %p255
      %p258 = scmp.ne.s32.totalorder %s243, %s257
      %p259 = scmp.eq.s32.totalorder %s36, 0
      %p260 = por %p258, %p259
      %s262 = sadd.s32 %s261, 1
      %p265 = scmp.eq.s32.totalorder %s30, 1
      %p266 = scmp.ne.s32.totalorder %s261, %s263
      %p267 = scmp.eq.s32.totalorder %s30, 0
      %p268 = por %p266, %p267
      %p269 = scmp.ne.s32.totalorder %s261, %s263
      %p270 = scmp.eq.s32.totalorder %s35, 1
      %p271 = por %p269, %p270
      %p272 = scmp.ne.s32.totalorder %s263, %s264
      %p273 = scmp.eq.s32.totalorder %s35, 0
      %p274 = por %p272, %p273
      %p275 = scmp.ne.s32.totalorder %s263, %s264
      %p276 = scmp.eq.s32.totalorder %s36, 1
      %p277 = por %p275, %p276
      %p279 = scmp.ne.s32.totalorder %s264, %s278
      %p280 = scmp.eq.s32.totalorder %s36, 0
      %p281 = por %p279, %p280
      %s283 = sadd.s32 %s282, 1
      %p286 = scmp.eq.s32.totalorder %s30, 1
      %p287 = scmp.ne.s32.totalorder %s282, %s284
      %p288 = scmp.eq.s32.totalorder %s30, 0
      %p289 = por %p287, %p288
      %p290 = scmp.ne.s32.totalorder %s282, %s284
      %p291 = scmp.eq.s32.totalorder %s35, 1
      %p292 = por %p290, %p291
      %p293 = scmp.ne.s32.totalorder %s284, %s285
      %p294 = scmp.eq.s32.totalorder %s35, 0
      %p295 = por %p293, %p294
      %p296 = scmp.ne.s32.totalorder %s284, %s285
      %p297 = scmp.eq.s32.totalorder %s36, 1
      %p298 = por %p296, %p297
      %p300 = scmp.ne.s32.totalorder %s285, %s299
      %p301 = scmp.eq.s32.totalorder %s36, 0
      %p302 = por %p300, %p301
      %s304 = sadd.s32 %s303, 1
      %p307 = scmp.eq.s32.totalorder %s30, 1
      %p308 = scmp.ne.s32.totalorder %s303, %s305
      %p309 = scmp.eq.s32.totalorder %s30, 0
      %p310 = por %p308, %p309
      %p311 = scmp.ne.s32.totalorder %s303, %s305
      %p312 = scmp.eq.s32.totalorder %s35, 1
      %p313 = por %p311, %p312
      %p314 = scmp.ne.s32.totalorder %s305, %s306
      %p315 = scmp.eq.s32.totalorder %s35, 0
      %p316 = por %p314, %p315
      %p317 = scmp.ne.s32.totalorder %s305, %s306
      %p318 = scmp.eq.s32.totalorder %s36, 1
      %p319 = por %p317, %p318
      %p321 = scmp.ne.s32.totalorder %s306, %s320
      %p322 = scmp.eq.s32.totalorder %s36, 0
      %p323 = por %p321, %p322
      %s325 = sadd.s32 %s324, 1
      %p328 = scmp.eq.s32.totalorder %s30, 1
      %p329 = scmp.ne.s32.totalorder %s324, %s326
      %p330 = scmp.eq.s32.totalorder %s30, 0
      %p331 = por %p329, %p330
      %p332 = scmp.ne.s32.totalorder %s324, %s326
      %p333 = scmp.eq.s32.totalorder %s35, 1
      %p334 = por %p332, %p333
      %p335 = scmp.ne.s32.totalorder %s326, %s327
      %p336 = scmp.eq.s32.totalorder %s35, 0
      %p337 = por %p335, %p336
      %p338 = scmp.ne.s32.totalorder %s326, %s327
      %p339 = scmp.eq.s32.totalorder %s36, 1
      %p340 = por %p338, %p339
      %p342 = scmp.ne.s32.totalorder %s327, %s341
      %p343 = scmp.eq.s32.totalorder %s36, 0
      %p344 = por %p342, %p343
      %s346 = sadd.s32 %s345, 1
      %p349 = scmp.eq.s32.totalorder %s30, 1
      %p350 = scmp.ne.s32.totalorder %s345, %s347
      %p351 = scmp.eq.s32.totalorder %s30, 0
      %p352 = por %p350, %p351
      %p353 = scmp.ne.s32.totalorder %s345, %s347
      %p354 = scmp.eq.s32.totalorder %s35, 1
      %p355 = por %p353, %p354
      %p356 = scmp.ne.s32.totalorder %s347, %s348
      %p357 = scmp.eq.s32.totalorder %s35, 0
      %p358 = por %p356, %p357
      %p359 = scmp.ne.s32.totalorder %s347, %s348
      %p360 = scmp.eq.s32.totalorder %s36, 1
      %p361 = por %p359, %p360
      %p363 = scmp.ne.s32.totalorder %s348, %s362
      %p364 = scmp.eq.s32.totalorder %s36, 0
      %p365 = por %p363, %p364
      %s367 = sadd.s32 %s366, 1
      %p370 = scmp.eq.s32.totalorder %s30, 1
      %p371 = scmp.ne.s32.totalorder %s366, %s368
      %p372 = scmp.eq.s32.totalorder %s30, 0
      %p373 = por %p371, %p372
      %p374 = scmp.ne.s32.totalorder %s366, %s368
      %p375 = scmp.eq.s32.totalorder %s35, 1
      %p376 = por %p374, %p375
      %p377 = scmp.ne.s32.totalorder %s368, %s369
      %p378 = scmp.eq.s32.totalorder %s35, 0
      %p379 = por %p377, %p378
      %p380 = scmp.ne.s32.totalorder %s368, %s369
      %p381 = scmp.eq.s32.totalorder %s36, 1
      %p382 = por %p380, %p381
      %p384 = scmp.ne.s32.totalorder %s369, %s383
      %p385 = scmp.eq.s32.totalorder %s36, 0
      %p386 = por %p384, %p385
      %s388 = sadd.s32 %s387, 1
      %p391 = scmp.eq.s32.totalorder %s30, 1
      %p392 = scmp.ne.s32.totalorder %s387, %s389
      %p393 = scmp.eq.s32.totalorder %s30, 0
      %p394 = por %p392, %p393
      %p395 = scmp.ne.s32.totalorder %s387, %s389
      %p396 = scmp.eq.s32.totalorder %s35, 1
      %p397 = por %p395, %p396
      %p398 = scmp.ne.s32.totalorder %s389, %s390
      %p399 = scmp.eq.s32.totalorder %s35, 0
      %p400 = por %p398, %p399
      %p401 = scmp.ne.s32.totalorder %s389, %s390
      %p402 = scmp.eq.s32.totalorder %s36, 1
      %p403 = por %p401, %p402
      %p405 = scmp.ne.s32.totalorder %s390, %s404
      %p406 = scmp.eq.s32.totalorder %s36, 0
      %p407 = por %p405, %p406
      %s409 = sadd.s32 %s408, 1
      %p412 = scmp.eq.s32.totalorder %s30, 1
      %p413 = scmp.ne.s32.totalorder %s408, %s410
      %p414 = scmp.eq.s32.totalorder %s30, 0
      %p415 = por %p413, %p414
      %p416 = scmp.ne.s32.totalorder %s408, %s410
      %p417 = scmp.eq.s32.totalorder %s35, 1
      %p418 = por %p416, %p417
      %p419 = scmp.ne.s32.totalorder %s410, %s411
      %p420 = scmp.eq.s32.totalorder %s35, 0
      %p421 = por %p419, %p420
      %p422 = scmp.ne.s32.totalorder %s410, %s411
      %p423 = scmp.eq.s32.totalorder %s36, 1
      %p424 = por %p422, %p423
      %p426 = scmp.ne.s32.totalorder %s411, %s425
      %p427 = scmp.eq.s32.totalorder %s36, 0
      %p428 = por %p426, %p427
      %s430 = sadd.s32 %s429, 1
      %p433 = scmp.eq.s32.totalorder %s30, 1
      %p434 = scmp.ne.s32.totalorder %s429, %s431
      %p435 = scmp.eq.s32.totalorder %s30, 0
      %p436 = por %p434, %p435
      %p437 = scmp.ne.s32.totalorder %s429, %s431
      %p438 = scmp.eq.s32.totalorder %s35, 1
      %p439 = por %p437, %p438
      %p440 = scmp.ne.s32.totalorder %s431, %s432
      %p441 = scmp.eq.s32.totalorder %s35, 0
      %p442 = por %p440, %p441
      %p443 = scmp.ne.s32.totalorder %s431, %s432
      %p444 = scmp.eq.s32.totalorder %s36, 1
      %p445 = por %p443, %p444
      %p447 = scmp.ne.s32.totalorder %s432, %s446
      %p448 = scmp.eq.s32.totalorder %s36, 0
      %p449 = por %p447, %p448
      %s451 = sadd.s32 %s450, 1
      %p454 = scmp.eq.s32.totalorder %s30, 1
      %p455 = scmp.ne.s32.totalorder %s450, %s452
      %p456 = scmp.eq.s32.totalorder %s30, 0
      %p457 = por %p455, %p456
      %p458 = scmp.ne.s32.totalorder %s450, %s452
      %p459 = scmp.eq.s32.totalorder %s35, 1
      %p460 = por %p458, %p459
      %p461 = scmp.ne.s32.totalorder %s452, %s453
      %p462 = scmp.eq.s32.totalorder %s35, 0
      %p463 = por %p461, %p462
      %p464 = scmp.ne.s32.totalorder %s452, %s453
      %p465 = scmp.eq.s32.totalorder %s36, 1
      %p466 = por %p464, %p465
      %p468 = scmp.ne.s32.totalorder %s453, %s467
      %p469 = scmp.eq.s32.totalorder %s36, 0
      %p470 = por %p468, %p469
      %s472 = sadd.s32 %s471, 1
      %p475 = scmp.eq.s32.totalorder %s30, 1
      %p476 = scmp.ne.s32.totalorder %s471, %s473
      %p477 = scmp.eq.s32.totalorder %s30, 0
      %p478 = por %p476, %p477
      %p479 = scmp.ne.s32.totalorder %s471, %s473
      %p480 = scmp.eq.s32.totalorder %s35, 1
      %p481 = por %p479, %p480
      %p482 = scmp.ne.s32.totalorder %s473, %s474
      %p483 = scmp.eq.s32.totalorder %s35, 0
      %p484 = por %p482, %p483
      %p485 = scmp.ne.s32.totalorder %s473, %s474
      %p486 = scmp.eq.s32.totalorder %s36, 1
      %p487 = por %p485, %p486
      %p489 = scmp.ne.s32.totalorder %s474, %s488
      %p490 = scmp.eq.s32.totalorder %s36, 0
      %p491 = por %p489, %p490
      %s493 = sadd.s32 %s492, 1
      %p496 = scmp.eq.s32.totalorder %s30, 1
      %p497 = scmp.ne.s32.totalorder %s492, %s494
      %p498 = scmp.eq.s32.totalorder %s30, 0
      %p499 = por %p497, %p498
      %p500 = scmp.ne.s32.totalorder %s492, %s494
      %p501 = scmp.eq.s32.totalorder %s35, 1
      %p502 = por %p500, %p501
      %p503 = scmp.ne.s32.totalorder %s494, %s495
      %p504 = scmp.eq.s32.totalorder %s35, 0
      %p505 = por %p503, %p504
      %p506 = scmp.ne.s32.totalorder %s494, %s495
      %p507 = scmp.eq.s32.totalorder %s36, 1
      %p508 = por %p506, %p507
      %p510 = scmp.ne.s32.totalorder %s495, %s509
      %p511 = scmp.eq.s32.totalorder %s36, 0
      %p512 = por %p510, %p511
      %s514 = sadd.s32 %s513, 1
      %p517 = scmp.eq.s32.totalorder %s30, 1
      %p518 = scmp.ne.s32.totalorder %s513, %s515
      %p519 = scmp.eq.s32.totalorder %s30, 0
      %p520 = por %p518, %p519
      %p521 = scmp.ne.s32.totalorder %s513, %s515
      %p522 = scmp.eq.s32.totalorder %s35, 1
      %p523 = por %p521, %p522
      %p524 = scmp.ne.s32.totalorder %s515, %s516
      %p525 = scmp.eq.s32.totalorder %s35, 0
      %p526 = por %p524, %p525
      %p527 = scmp.ne.s32.totalorder %s515, %s516
      %p528 = scmp.eq.s32.totalorder %s36, 1
      %p529 = por %p527, %p528
      %p531 = scmp.ne.s32.totalorder %s516, %s530
      %p532 = scmp.eq.s32.totalorder %s36, 0
      %p533 = por %p531, %p532
      %s534 = ssub.s32 %s37, %s49
      %s535 = ssub.s32 %s38, %s45
      %s536 = sor.u32 %s534, %s535
      %p537 = scmp.eq.s32.totalorder %s536, 0
      %s539 = sadd.s32 %s538, 1
      %s540 = scalar_select %p537, %s538, %s539
      %p543 = pneg %p537
      %p544 = scmp.eq.s32.totalorder %s30, 1
      %p545 = por %p543, %p544
      %p546 = scmp.ne.s32.totalorder %s538, %s541
      %p547 = scmp.eq.s32.totalorder %s30, 0
      %p548 = por %p546, %p547
      %p549 = scmp.ne.s32.totalorder %s538, %s541
      %p550 = scmp.eq.s32.totalorder %s35, 1
      %p551 = por %p549, %p550
      %p552 = scmp.ne.s32.totalorder %s541, %s542
      %p553 = scmp.eq.s32.totalorder %s35, 0
      %p554 = por %p552, %p553
      %p555 = scmp.ne.s32.totalorder %s541, %s542
      %p556 = scmp.eq.s32.totalorder %s36, 1
      %p557 = por %p555, %p556
      %p559 = scmp.ne.s32.totalorder %s542, %s558
      %p560 = scmp.eq.s32.totalorder %s36, 0
      %p561 = por %p559, %p560
      %p562 = scmp.le.s32.totalorder 1, %s30
      %p563 = scmp.lt.s32.totalorder %s30, 3
      %p564 = pnand %p562, %p563
      %p565 = pneg %p564
      // Predicated region
      $region9: #{tpu_custom_call.1} parent=5 // pred_check
        _
      $region10: #{tpu_custom_call.1} parent=5 // pred_check_branch
        %567 = sbr.rel (%p564) target = $region12
      $region11: #{tpu_custom_call.1} parent=5 // pred_region
        %s568 = ssub.s32 %s30, 1
        // Predicated region
        $region13: #{tpu_custom_call.1} parent=11 // pred_check
          %p569 = pneg %p253
        $region14: #{tpu_custom_call.1} parent=11 // pred_check_branch
          %571 = sbr.rel (%p569) target = $region16
        $region15: #{tpu_custom_call.1} parent=11 // pred_region
          _
        $region16: #{tpu_custom_call.1} parent=11 // pred_fallthru
          _
        // Predicated region
        $region17: #{tpu_custom_call.1} parent=11 // pred_check
          %p572 = pneg %p274
        $region18: #{tpu_custom_call.1} parent=11 // pred_check_branch
          %574 = sbr.rel (%p572) target = $region20
        $region19: #{tpu_custom_call.1} parent=11 // pred_region
          _
        $region20: #{tpu_custom_call.1} parent=11 // pred_fallthru
          _
        // Predicated region
        $region21: #{tpu_custom_call.1} parent=11 // pred_check
          %p575 = pneg %p295
        $region22: #{tpu_custom_call.1} parent=11 // pred_check_branch
          %577 = sbr.rel (%p575) target = $region24
        $region23: #{tpu_custom_call.1} parent=11 // pred_region
          _
        $region24: #{tpu_custom_call.1} parent=11 // pred_fallthru
          _
        // Predicated region
        $region25: #{tpu_custom_call.1} parent=11 // pred_check
          %p578 = pneg %p316
        $region26: #{tpu_custom_call.1} parent=11 // pred_check_branch
          %580 = sbr.rel (%p578) target = $region28
        $region27: #{tpu_custom_call.1} parent=11 // pred_region
          _
        $region28: #{tpu_custom_call.1} parent=11 // pred_fallthru
          _
        // Predicated region
        $region29: #{tpu_custom_call.1} parent=11 // pred_check
          %p581 = pneg %p337
        $region30: #{tpu_custom_call.1} parent=11 // pred_check_branch
          %583 = sbr.rel (%p581) target = $region32
        $region31: #{tpu_custom_call.1} parent=11 // pred_region
          _
        $region32: #{tpu_custom_call.1} parent=11 // pred_fallthru
          _
        // Predicated region
        $region33: #{tpu_custom_call.1} parent=11 // pred_check
          %p584 = pneg %p358
        $region34: #{tpu_custom_call.1} parent=11 // pred_check_branch
          %586 = sbr.rel (%p584) target = $region36
        $region35: #{tpu_custom_call.1} parent=11 // pred_region
          _
        $region36: #{tpu_custom_call.1} parent=11 // pred_fallthru
          _
        // Predicated region
        $region37: #{tpu_custom_call.1} parent=11 // pred_check
          %p587 = pneg %p379
        $region38: #{tpu_custom_call.1} parent=11 // pred_check_branch
          %589 = sbr.rel (%p587) target = $region40
        $region39: #{tpu_custom_call.1} parent=11 // pred_region
          _
        $region40: #{tpu_custom_call.1} parent=11 // pred_fallthru
          _
        // Predicated region
        $region41: #{tpu_custom_call.1} parent=11 // pred_check
          %p590 = pneg %p400
        $region42: #{tpu_custom_call.1} parent=11 // pred_check_branch
          %592 = sbr.rel (%p590) target = $region44
        $region43: #{tpu_custom_call.1} parent=11 // pred_region
          _
        $region44: #{tpu_custom_call.1} parent=11 // pred_fallthru
          _
        // Predicated region
        $region45: #{tpu_custom_call.1} parent=11 // pred_check
          %p593 = pneg %p421
        $region46: #{tpu_custom_call.1} parent=11 // pred_check_branch
          %595 = sbr.rel (%p593) target = $region48
        $region47: #{tpu_custom_call.1} parent=11 // pred_region
          _
        $region48: #{tpu_custom_call.1} parent=11 // pred_fallthru
          _
        // Predicated region
        $region49: #{tpu_custom_call.1} parent=11 // pred_check
          %p596 = pneg %p442
        $region50: #{tpu_custom_call.1} parent=11 // pred_check_branch
          %598 = sbr.rel (%p596) target = $region52
        $region51: #{tpu_custom_call.1} parent=11 // pred_region
          _
        $region52: #{tpu_custom_call.1} parent=11 // pred_fallthru
          _
        // Predicated region
        $region53: #{tpu_custom_call.1} parent=11 // pred_check
          %p599 = pneg %p463
        $region54: #{tpu_custom_call.1} parent=11 // pred_check_branch
          %601 = sbr.rel (%p599) target = $region56
        $region55: #{tpu_custom_call.1} parent=11 // pred_region
          _
        $region56: #{tpu_custom_call.1} parent=11 // pred_fallthru
          _
        // Predicated region
        $region57: #{tpu_custom_call.1} parent=11 // pred_check
          %p602 = pneg %p484
        $region58: #{tpu_custom_call.1} parent=11 // pred_check_branch
          %604 = sbr.rel (%p602) target = $region60
        $region59: #{tpu_custom_call.1} parent=11 // pred_region
          _
        $region60: #{tpu_custom_call.1} parent=11 // pred_fallthru
          _
        // Predicated region
        $region61: #{tpu_custom_call.1} parent=11 // pred_check
          %p605 = pneg %p505
        $region62: #{tpu_custom_call.1} parent=11 // pred_check_branch
          %607 = sbr.rel (%p605) target = $region64
        $region63: #{tpu_custom_call.1} parent=11 // pred_region
          _
        $region64: #{tpu_custom_call.1} parent=11 // pred_fallthru
          _
        // Predicated region
        $region65: #{tpu_custom_call.1} parent=11 // pred_check
          %p608 = pneg %p526
        $region66: #{tpu_custom_call.1} parent=11 // pred_check_branch
          %610 = sbr.rel (%p608) target = $region68
        $region67: #{tpu_custom_call.1} parent=11 // pred_region
          _
        $region68: #{tpu_custom_call.1} parent=11 // pred_fallthru
          _
      $region12: #{tpu_custom_call.1} parent=5 // pred_fallthru
        _
      %p611 = scmp.lt.s32.totalorder %s30, 2
      // Predicated region
      $region69: #{tpu_custom_call.1} parent=5 // pred_check
        %p612 = pneg %p611
      $region70: #{tpu_custom_call.1} parent=5 // pred_check_branch
        %614 = sbr.rel (%p612) target = $region72
      $region71: #{tpu_custom_call.1} parent=5 // pred_region
        // Predicated region
        $region73: #{tpu_custom_call.1} parent=71 // pred_check
          %p615 = pneg %p64
        $region74: #{tpu_custom_call.1} parent=71 // pred_check_branch
          %617 = sbr.rel (%p615) target = $region76
        $region75: #{tpu_custom_call.1} parent=71 // pred_region
          %p618 = scmp.lt.s32.totalorder %s37, 1
          %s619 = scalar_select %p618, %s37, 1
          %p620 = scmp.lt.s32.totalorder %s38, 0
          %s621 = scalar_select %p620, %s38, 0
          %s622 = sadd.s32 %s621, %s619
          %s623 = smul.addr %s622, 8
          %s624 = scalar_lea.vmem %s0, %s623
        $region76: #{tpu_custom_call.1} parent=71 // pred_fallthru
          _
        // Predicated region
        $region77: #{tpu_custom_call.1} parent=71 // pred_check
          %p625 = pneg %p90
        $region78: #{tpu_custom_call.1} parent=71 // pred_check_branch
          %627 = sbr.rel (%p625) target = $region80
        $region79: #{tpu_custom_call.1} parent=71 // pred_region
          %p628 = scmp.lt.s32.totalorder %s37, 1
          %s629 = scalar_select %p628, %s37, 1
          %s630 = smul.addr %s629, 8
          %s631 = scalar_lea.vmem %s1, %s630
        $region80: #{tpu_custom_call.1} parent=71 // pred_fallthru
          _
        // Predicated region
        $region81: #{tpu_custom_call.1} parent=71 // pred_check
          %p632 = pneg %p116
        $region82: #{tpu_custom_call.1} parent=71 // pred_check_branch
          %634 = sbr.rel (%p632) target = $region84
        $region83: #{tpu_custom_call.1} parent=71 // pred_region
          %p635 = scmp.lt.s32.totalorder %s37, 1
          %s636 = scalar_select %p635, %s37, 1
          %s637 = smul.addr %s636, 8
          %s638 = scalar_lea.vmem %s2, %s637
        $region84: #{tpu_custom_call.1} parent=71 // pred_fallthru
          _
        // Predicated region
        $region85: #{tpu_custom_call.1} parent=71 // pred_check
          %p639 = pneg %p144
        $region86: #{tpu_custom_call.1} parent=71 // pred_check_branch
          %641 = sbr.rel (%p639) target = $region88
        $region87: #{tpu_custom_call.1} parent=71 // pred_region
          %p642 = scmp.lt.s32.totalorder %s37, 1
          %s643 = scalar_select %p642, %s37, 1
          %p644 = scmp.lt.s32.totalorder %s38, 0
          %s645 = scalar_select %p644, %s38, 0
          %s646 = sadd.s32 %s645, %s643
          %s647 = smul.addr %s646, 8
          %s648 = scalar_lea.vmem %s3, %s647
        $region88: #{tpu_custom_call.1} parent=71 // pred_fallthru
          _
        // Predicated region
        $region89: #{tpu_custom_call.1} parent=71 // pred_check
          %p649 = pneg %p170
        $region90: #{tpu_custom_call.1} parent=71 // pred_check_branch
          %651 = sbr.rel (%p649) target = $region92
        $region91: #{tpu_custom_call.1} parent=71 // pred_region
          %p652 = scmp.lt.s32.totalorder %s37, 1
          %s653 = scalar_select %p652, %s37, 1
          %s654 = smul.addr %s653, 8
          %s655 = scalar_lea.vmem %s4, %s654
        $region92: #{tpu_custom_call.1} parent=71 // pred_fallthru
          _
        // Predicated region
        $region93: #{tpu_custom_call.1} parent=71 // pred_check
          %p656 = pneg %p198
        $region94: #{tpu_custom_call.1} parent=71 // pred_check_branch
          %658 = sbr.rel (%p656) target = $region96
        $region95: #{tpu_custom_call.1} parent=71 // pred_region
          %p659 = scmp.lt.s32.totalorder %s37, 1
          %s660 = scalar_select %p659, %s37, 1
          %p661 = scmp.lt.s32.totalorder %s38, 0
          %s662 = scalar_select %p661, %s38, 0
          %s663 = sadd.s32 %s662, %s660
          %s664 = smul.addr %s663, 8
          %s665 = scalar_lea.vmem %s5, %s664
        $region96: #{tpu_custom_call.1} parent=71 // pred_fallthru
          _
        // Predicated region
        $region97: #{tpu_custom_call.1} parent=71 // pred_check
          %p666 = pneg %p226
        $region98: #{tpu_custom_call.1} parent=71 // pred_check_branch
          %668 = sbr.rel (%p666) target = $region100
        $region99: #{tpu_custom_call.1} parent=71 // pred_region
          %p669 = scmp.lt.s32.totalorder %s37, 1
          %s670 = scalar_select %p669, %s37, 1
          %p671 = scmp.lt.s32.totalorder %s38, 0
          %s672 = scalar_select %p671, %s38, 0
          %s673 = sadd.s32 %s672, %s670
          %s674 = smul.addr %s673, 8
          %s675 = scalar_lea.vmem %s6, %s674
        $region100: #{tpu_custom_call.1} parent=71 // pred_fallthru
          _
      $region72: #{tpu_custom_call.1} parent=5 // pred_fallthru
        _
      %p676 = scmp.le.s32.totalorder 1, %s30
      %p677 = scmp.lt.s32.totalorder %s30, 3
      %p678 = pnand %p676, %p677
      %p679 = pneg %p678
      // Predicated region
      $region101: #{tpu_custom_call.1} parent=5 // pred_check
        _
      $region102: #{tpu_custom_call.1} parent=5 // pred_check_branch
        %681 = sbr.rel (%p678) target = $region104
      $region103: #{tpu_custom_call.1} parent=5 // pred_region
        %s682 = ssub.s32 %s30, 1
        %p683 = scmp.lt.s32.totalorder %s39, 1
        %s684 = scalar_select %p683, %s39, 1
        %p685 = scmp.lt.s32.totalorder %s40, 0
        %s686 = scalar_select %p685, %s40, 0
        %s687 = sadd.s32 %s686, %s684
        %s688 = smul.addr %s687, 8
        %s689 = scalar_lea.vmem %s0, %s688
        %p690 = pneg %p70
        %p691 = pneg %p67
        %p692 = scmp.lt.s32.totalorder %s39, 1
        %s693 = scalar_select %p692, %s39, 1
        %s694 = smul.addr %s693, 8
        %s695 = scalar_lea.vmem %s1, %s694
        %p696 = pneg %p96
        %p697 = pneg %p93
        %p698 = scmp.lt.s32.totalorder %s39, 1
        %s699 = scalar_select %p698, %s39, 1
        %s700 = smul.addr %s699, 8
        %s701 = scalar_lea.vmem %s2, %s700
        %p702 = pneg %p122
        %p703 = pneg %p119
        %p704 = scmp.lt.s32.totalorder %s39, 1
        %s705 = scalar_select %p704, %s39, 1
        %p706 = scmp.lt.s32.totalorder %s40, 0
        %s707 = scalar_select %p706, %s40, 0
        %s708 = sadd.s32 %s707, %s705
        %s709 = smul.addr %s708, 8
        %s710 = scalar_lea.vmem %s3, %s709
        %p711 = pneg %p150
        %p712 = pneg %p147
        %p713 = scmp.lt.s32.totalorder %s39, 1
        %s714 = scalar_select %p713, %s39, 1
        %s715 = smul.addr %s714, 8
        %s716 = scalar_lea.vmem %s4, %s715
        %p717 = pneg %p176
        %p718 = pneg %p173
        %p719 = scmp.lt.s32.totalorder %s39, 1
        %s720 = scalar_select %p719, %s39, 1
        %p721 = scmp.lt.s32.totalorder %s40, 0
        %s722 = scalar_select %p721, %s40, 0
        %s723 = sadd.s32 %s722, %s720
        %s724 = smul.addr %s723, 8
        %s725 = scalar_lea.vmem %s5, %s724
        %p726 = pneg %p204
        %p727 = pneg %p201
        %p728 = scmp.lt.s32.totalorder %s39, 1
        %s729 = scalar_select %p728, %s39, 1
        %p730 = scmp.lt.s32.totalorder %s40, 0
        %s731 = scalar_select %p730, %s40, 0
        %s732 = sadd.s32 %s731, %s729
        %s733 = smul.addr %s732, 8
        %s734 = scalar_lea.vmem %s6, %s733
        %p735 = pneg %p232
        %p736 = pneg %p229
        %p737 = pneg %p253
        %p738 = pneg %p250
        %p739 = pneg %p274
        %p740 = pneg %p271
        %p741 = pneg %p295
        %p742 = pneg %p292
        %p743 = pneg %p316
        %p744 = pneg %p313
        %p745 = pneg %p337
        %p746 = pneg %p334
        %p747 = pneg %p358
        %p748 = pneg %p355
        %p749 = pneg %p379
        %p750 = pneg %p376
        %p751 = pneg %p400
        %p752 = pneg %p397
        %p753 = pneg %p421
        %p754 = pneg %p418
        %p755 = pneg %p442
        %p756 = pneg %p439
        %p757 = pneg %p463
        %p758 = pneg %p460
        %p759 = pneg %p484
        %p760 = pneg %p481
        %p761 = pneg %p505
        %p762 = pneg %p502
        %p763 = pneg %p526
        %p764 = pneg %p523
        %p765 = pneg %p554
        %p766 = pneg %p551
        %s767 = sand.u32 %s541, 1
        %s768 = scalar_lea.sflag [#allocation3], %s767
        %s769 = sand.u32 %s541, 1
        %s770 = smul.addr %s769, 8
        %s771 = scalar_lea.vmem [#allocation2], %s770
        %p772 = scmp.lt.s32.totalorder %s39, 1
        %s773 = scalar_select %p772, %s39, 1
        %p774 = scmp.lt.s32.totalorder %s40, 0
        %s775 = scalar_select %p774, %s40, 0
        %s776 = sadd.s32 %s775, %s773
        %s777 = smul.addr %s776, 8
        %s778 = scalar_lea.vmem %s0, %s777
        %p779 = scmp.lt.s32.totalorder %s39, 1
        %s780 = scalar_select %p779, %s39, 1
        %s781 = smul.addr %s780, 8
        %s782 = scalar_lea.vmem %s1, %s781
        %p783 = scmp.lt.s32.totalorder %s39, 1
        %s784 = scalar_select %p783, %s39, 1
        %s785 = smul.addr %s784, 8
        %s786 = scalar_lea.vmem %s2, %s785
        %p787 = scmp.lt.s32.totalorder %s39, 1
        %s788 = scalar_select %p787, %s39, 1
        %p789 = scmp.lt.s32.totalorder %s40, 0
        %s790 = scalar_select %p789, %s40, 0
        %s791 = sadd.s32 %s790, %s788
        %s792 = smul.addr %s791, 8
        %s793 = scalar_lea.vmem %s3, %s792
        %p794 = scmp.lt.s32.totalorder %s39, 1
        %s795 = scalar_select %p794, %s39, 1
        %s796 = smul.addr %s795, 8
        %s797 = scalar_lea.vmem %s4, %s796
        %p798 = scmp.lt.s32.totalorder %s39, 1
        %s799 = scalar_select %p798, %s39, 1
        %p800 = scmp.lt.s32.totalorder %s40, 0
        %s801 = scalar_select %p800, %s40, 0
        %s802 = sadd.s32 %s801, %s799
        %s803 = smul.addr %s802, 8
        %s804 = scalar_lea.vmem %s5, %s803
        %p805 = scmp.lt.s32.totalorder %s39, 1
        %s806 = scalar_select %p805, %s39, 1
        %p807 = scmp.lt.s32.totalorder %s40, 0
        %s808 = scalar_select %p807, %s40, 0
        %s809 = sadd.s32 %s808, %s806
        %s810 = smul.addr %s809, 8
        %s811 = scalar_lea.vmem %s6, %s810
        %v813 = vld [vmem:[%s778] sm:$0xff]
        %v814 = vld [vmem:[%s782] sm:$0xff]
        %v815 = vld [vmem:[%s786] sm:$0xff]
        %v816 = vld [vmem:[%s793] sm:$0xff]
        %v817 = vld [vmem:[%s797] sm:$0xff]
        %v818 = vld [vmem:[%s804] sm:$0xff]
        %v819 = vld [vmem:[%s811] sm:$0xff]
        %v820 = vpack.c.bf16 %v813, %v813
        %v821 = vpack.c.bf16 %v814, %v814
        %v822 = vpack.c.bf16 %v815, %v815
        %v823 = vld [vmem:[%s7] sm:$0xf]
        %v824 = vld [vmem:[%s7 + $0x4] sm:$0xf]
        %v825 = vld [vmem:[%s7 + $0x8] sm:$0xf]
        %v826 = vld [vmem:[%s7 + $0xc] sm:$0xf]
        %v827 = vld [vmem:[%s7 + $0x10] sm:$0xf]
        %v828 = vld [vmem:[%s7 + $0x14] sm:$0xf]
        %v829 = vld [vmem:[%s7 + $0x18] sm:$0xf]
        %v830 = vld [vmem:[%s7 + $0x1c] sm:$0xf]
        %v831 = vld [vmem:[%s8] sm:$0x1]
        %v832 = vld [vmem:[%s8 + $0x1] sm:$0x1]
        %v835 = vlaneseq
        %v836 = vshrl.u32 %v835, 7
        %v837 = vsub.s32 0, %v836
        %v838 = vrot.slane %v831, %v837
        %v839 = vlaneseq
        %v840 = vshrl.u32 %v839, 7
        %v841 = vsub.s32 0, %v840
        %v842 = vrot.slane %v832, %v841
        %v849 = vunpack.c.l.b16 %v823
        %v850 = vunpack.c.l.b16 %v824
        %v851 = vunpack.c.l.b16 %v825
        %v852 = vunpack.c.l.b16 %v826
        %v853 = vpack.c.b16 %v850, %v849
        %v854 = vpack.c.b16 %v852, %v851
        %vm857 = vcmask 261120
        %v859 = vsel %vm857, %v820, 0
        %861 = vmatprep.subr.bf16.mxu0 0
        %862 = vmatpush1.bf16.msra.mxu0 0
        %863 = vmatprep.subr.bf16.mxu0 0
        %864 = vmatpush1.bf16.msra.mxu0 0
        %865 = vmatprep.subr.bf16.mxu0 0
        %866 = vmatpush1.bf16.msra.mxu0 0
        %867 = vmatprep.subr.bf16.mxu0 0
        %868 = vmatpush1.bf16.msra.mxu0 0
        %869 = vmatprep.subr.bf16.mxu0 0
        %870 = vmatpush1.bf16.msra.mxu0 0
        %871 = vmatprep.subr.bf16.mxu0 0
        %872 = vmatpush1.bf16.msra.mxu0 0
        %873 = vmatprep.subr.bf16.mxu0 0
        %874 = vmatpush1.bf16.msra.mxu0 %v854
        %875 = vmatprep.subr.bf16.mxu0 0
        %876 = vmatpush1.bf16.msra.mxu0 %v853
        %877 = vmatprep.subr.bf16.mxu0 0
        %878 = vmatpush2.bf16.msra.mxu0 0
        %879 = vmatprep.subr.bf16.mxu0 0
        %880 = vmatpush2.bf16.msra.mxu0 0
        %881 = vmatprep.subr.bf16.mxu0 0
        %882 = vmatpush2.bf16.msra.mxu0 0
        %883 = vmatprep.subr.bf16.mxu0 0
        %884 = vmatpush2.bf16.msra.mxu0 0
        %885 = vmatprep.subr.bf16.mxu0 0
        %886 = vmatpush2.bf16.msra.mxu0 0
        %887 = vmatprep.subr.bf16.mxu0 0
        %888 = vmatpush2.bf16.msra.mxu0 0
        %889 = vmatprep.subr.bf16.mxu0 0
        %890 = vmatpush2.bf16.msra.mxu0 0
        %891 = vmatprep.subr.bf16.mxu0 0
        %892 = vmatpush2.bf16.msra.mxu0 0
        %893 = vmatprep.mubr.bf16.mxu0 0
        %894 = vmatmul.mubr.bf16.gmra.mxu0 %v859
        %v895 = vpop.f32.mrf.mxu0
        %v896 = vadd.f32 %v838, %v895
        %v897 = vpop.f32.mrf.mxu0
        %v898 = vpop.f32.mrf.mxu0
        %v899 = vpop.f32.mrf.mxu0
        %900 = vdwg.mxu0
        %v905 = vunpack.c.l.b16 %v827
        %v906 = vunpack.c.l.b16 %v828
        %v907 = vunpack.c.l.b16 %v829
        %v908 = vunpack.c.l.b16 %v830
        %v909 = vpack.c.b16 %v906, %v905
        %v910 = vpack.c.b16 %v908, %v907
        %913 = vmatprep.subr.bf16.mxu0 0
        %914 = vmatpush1.bf16.msra.mxu0 0
        %915 = vmatprep.subr.bf16.mxu0 0
        %916 = vmatpush1.bf16.msra.mxu0 0
        %917 = vmatprep.subr.bf16.mxu0 0
        %918 = vmatpush1.bf16.msra.mxu0 0
        %919 = vmatprep.subr.bf16.mxu0 0
        %920 = vmatpush1.bf16.msra.mxu0 0
        %921 = vmatprep.subr.bf16.mxu0 0
        %922 = vmatpush1.bf16.msra.mxu0 0
        %923 = vmatprep.subr.bf16.mxu0 0
        %924 = vmatpush1.bf16.msra.mxu0 0
        %925 = vmatprep.subr.bf16.mxu0 0
        %926 = vmatpush1.bf16.msra.mxu0 %v910
        %927 = vmatprep.subr.bf16.mxu0 0
        %928 = vmatpush1.bf16.msra.mxu0 %v909
        %929 = vmatprep.subr.bf16.mxu0 0
        %930 = vmatpush2.bf16.msra.mxu0 0
        %931 = vmatprep.subr.bf16.mxu0 0
        %932 = vmatpush2.bf16.msra.mxu0 0
        %933 = vmatprep.subr.bf16.mxu0 0
        %934 = vmatpush2.bf16.msra.mxu0 0
        %935 = vmatprep.subr.bf16.mxu0 0
        %936 = vmatpush2.bf16.msra.mxu0 0
        %937 = vmatprep.subr.bf16.mxu0 0
        %938 = vmatpush2.bf16.msra.mxu0 0
        %939 = vmatprep.subr.bf16.mxu0 0
        %940 = vmatpush2.bf16.msra.mxu0 0
        %941 = vmatprep.subr.bf16.mxu0 0
        %942 = vmatpush2.bf16.msra.mxu0 0
        %943 = vmatprep.subr.bf16.mxu0 0
        %944 = vmatpush2.bf16.msra.mxu0 0
        %945 = vmatprep.mubr.bf16.mxu0 0
        %946 = vmatmul.mubr.bf16.gmra.mxu0 %v859
        %v947 = vpop.f32.mrf.mxu0
        %v948 = vadd.f32 %v842, %v947
        %v949 = vpop.f32.mrf.mxu0
        %v950 = vpop.f32.mrf.mxu0
        %v951 = vpop.f32.mrf.mxu0
        %952 = vdwg.mxu0
        %954 = vset.pattern.permute.xlu0 0
        %955 = vperm.xlu0 %954, %v816
        %v956 = vpop.permute.xlu0 %955
        %v958 = vmul.f32 %v896, %v956
        %v959 = vmul.f32 %v948, %v956
        %v960 = vld [vmem:[%s9] sm:$0xf]
        %v961 = vld [vmem:[%s9 + $0x4] sm:$0xf]
        %v962 = vld [vmem:[%s9 + $0x8] sm:$0xf]
        %v963 = vld [vmem:[%s9 + $0xc] sm:$0xf]
        %v964 = vld [vmem:[%s9 + $0x10] sm:$0xf]
        %v965 = vld [vmem:[%s9 + $0x14] sm:$0xf]
        %v966 = vld [vmem:[%s9 + $0x18] sm:$0xf]
        %v967 = vld [vmem:[%s9 + $0x1c] sm:$0xf]
        %v968 = vld [vmem:[%s10] sm:$0x1]
        %v969 = vld [vmem:[%s10 + $0x1] sm:$0x1]
        %v972 = vlaneseq
        %v973 = vshrl.u32 %v972, 7
        %v974 = vsub.s32 0, %v973
        %v975 = vrot.slane %v968, %v974
        %v976 = vlaneseq
        %v977 = vshrl.u32 %v976, 7
        %v978 = vsub.s32 0, %v977
        %v979 = vrot.slane %v969, %v978
        %v986 = vunpack.c.l.b16 %v960
        %v987 = vunpack.c.l.b16 %v961
        %v988 = vunpack.c.l.b16 %v962
        %v989 = vunpack.c.l.b16 %v963
        %v990 = vpack.c.b16 %v987, %v986
        %v991 = vpack.c.b16 %v989, %v988
        %v995 = vsel %vm857, %v821, 0
        %997 = vmatprep.subr.bf16.mxu0 0
        %998 = vmatpush1.bf16.msra.mxu0 0
        %999 = vmatprep.subr.bf16.mxu0 0
        %1000 = vmatpush1.bf16.msra.mxu0 0
        %1001 = vmatprep.subr.bf16.mxu0 0
        %1002 = vmatpush1.bf16.msra.mxu0 0
        %1003 = vmatprep.subr.bf16.mxu0 0
        %1004 = vmatpush1.bf16.msra.mxu0 0
        %1005 = vmatprep.subr.bf16.mxu0 0
        %1006 = vmatpush1.bf16.msra.mxu0 0
        %1007 = vmatprep.subr.bf16.mxu0 0
        %1008 = vmatpush1.bf16.msra.mxu0 0
        %1009 = vmatprep.subr.bf16.mxu0 0
        %1010 = vmatpush1.bf16.msra.mxu0 %v991
        %1011 = vmatprep.subr.bf16.mxu0 0
        %1012 = vmatpush1.bf16.msra.mxu0 %v990
        %1013 = vmatprep.subr.bf16.mxu0 0
        %1014 = vmatpush2.bf16.msra.mxu0 0
        %1015 = vmatprep.subr.bf16.mxu0 0
        %1016 = vmatpush2.bf16.msra.mxu0 0
        %1017 = vmatprep.subr.bf16.mxu0 0
        %1018 = vmatpush2.bf16.msra.mxu0 0
        %1019 = vmatprep.subr.bf16.mxu0 0
        %1020 = vmatpush2.bf16.msra.mxu0 0
        %1021 = vmatprep.subr.bf16.mxu0 0
        %1022 = vmatpush2.bf16.msra.mxu0 0
        %1023 = vmatprep.subr.bf16.mxu0 0
        %1024 = vmatpush2.bf16.msra.mxu0 0
        %1025 = vmatprep.subr.bf16.mxu0 0
        %1026 = vmatpush2.bf16.msra.mxu0 0
        %1027 = vmatprep.subr.bf16.mxu0 0
        %1028 = vmatpush2.bf16.msra.mxu0 0
        %1029 = vmatprep.mubr.bf16.mxu0 0
        %1030 = vmatmul.mubr.bf16.gmra.mxu0 %v995
        %v1031 = vpop.f32.mrf.mxu0
        %v1032 = vadd.f32 %v975, %v1031
        %v1033 = vpop.f32.mrf.mxu0
        %v1034 = vpop.f32.mrf.mxu0
        %v1035 = vpop.f32.mrf.mxu0
        %1036 = vdwg.mxu0
        %v1041 = vunpack.c.l.b16 %v964
        %v1042 = vunpack.c.l.b16 %v965
        %v1043 = vunpack.c.l.b16 %v966
        %v1044 = vunpack.c.l.b16 %v967
        %v1045 = vpack.c.b16 %v1042, %v1041
        %v1046 = vpack.c.b16 %v1044, %v1043
        %1049 = vmatprep.subr.bf16.mxu0 0
        %1050 = vmatpush1.bf16.msra.mxu0 0
        %1051 = vmatprep.subr.bf16.mxu0 0
        %1052 = vmatpush1.bf16.msra.mxu0 0
        %1053 = vmatprep.subr.bf16.mxu0 0
        %1054 = vmatpush1.bf16.msra.mxu0 0
        %1055 = vmatprep.subr.bf16.mxu0 0
        %1056 = vmatpush1.bf16.msra.mxu0 0
        %1057 = vmatprep.subr.bf16.mxu0 0
        %1058 = vmatpush1.bf16.msra.mxu0 0
        %1059 = vmatprep.subr.bf16.mxu0 0
        %1060 = vmatpush1.bf16.msra.mxu0 0
        %1061 = vmatprep.subr.bf16.mxu0 0
        %1062 = vmatpush1.bf16.msra.mxu0 %v1046
        %1063 = vmatprep.subr.bf16.mxu0 0
        %1064 = vmatpush1.bf16.msra.mxu0 %v1045
        %1065 = vmatprep.subr.bf16.mxu0 0
        %1066 = vmatpush2.bf16.msra.mxu0 0
        %1067 = vmatprep.subr.bf16.mxu0 0
        %1068 = vmatpush2.bf16.msra.mxu0 0
        %1069 = vmatprep.subr.bf16.mxu0 0
        %1070 = vmatpush2.bf16.msra.mxu0 0
        %1071 = vmatprep.subr.bf16.mxu0 0
        %1072 = vmatpush2.bf16.msra.mxu0 0
        %1073 = vmatprep.subr.bf16.mxu0 0
        %1074 = vmatpush2.bf16.msra.mxu0 0
        %1075 = vmatprep.subr.bf16.mxu0 0
        %1076 = vmatpush2.bf16.msra.mxu0 0
        %1077 = vmatprep.subr.bf16.mxu0 0
        %1078 = vmatpush2.bf16.msra.mxu0 0
        %1079 = vmatprep.subr.bf16.mxu0 0
        %1080 = vmatpush2.bf16.msra.mxu0 0
        %1081 = vmatprep.mubr.bf16.mxu0 0
        %1082 = vmatmul.mubr.bf16.gmra.mxu0 %v995
        %v1083 = vpop.f32.mrf.mxu0
        %v1084 = vadd.f32 %v979, %v1083
        %v1085 = vpop.f32.mrf.mxu0
        %v1086 = vpop.f32.mrf.mxu0
        %v1087 = vpop.f32.mrf.mxu0
        %1088 = vdwg.mxu0
        %1090 = vset.pattern.permute.xlu0 0
        %1091 = vperm.xlu0 %1090, %v817
        %v1092 = vpop.permute.xlu0 %1091
        %v1094 = vmul.f32 %v1032, %v1092
        %v1095 = vmul.f32 %v1084, %v1092
        %v1096 = vld [vmem:[%s11] sm:$0xf]
        %v1097 = vld [vmem:[%s11 + $0x4] sm:$0xf]
        %v1098 = vld [vmem:[%s11 + $0x8] sm:$0xf]
        %v1099 = vld [vmem:[%s11 + $0xc] sm:$0xf]
        %v1100 = vld [vmem:[%s11 + $0x10] sm:$0xf]
        %v1101 = vld [vmem:[%s11 + $0x14] sm:$0xf]
        %v1102 = vld [vmem:[%s11 + $0x18] sm:$0xf]
        %v1103 = vld [vmem:[%s11 + $0x1c] sm:$0xf]
        %v1104 = vld [vmem:[%s12] sm:$0x1]
        %v1105 = vld [vmem:[%s12 + $0x1] sm:$0x1]
        %v1108 = vlaneseq
        %v1109 = vshrl.u32 %v1108, 7
        %v1110 = vsub.s32 0, %v1109
        %v1111 = vrot.slane %v1104, %v1110
        %v1112 = vlaneseq
        %v1113 = vshrl.u32 %v1112, 7
        %v1114 = vsub.s32 0, %v1113
        %v1115 = vrot.slane %v1105, %v1114
        %v1122 = vunpack.c.l.b16 %v1096
        %v1123 = vunpack.c.l.b16 %v1097
        %v1124 = vunpack.c.l.b16 %v1098
        %v1125 = vunpack.c.l.b16 %v1099
        %v1126 = vpack.c.b16 %v1123, %v1122
        %v1127 = vpack.c.b16 %v1125, %v1124
        %v1131 = vsel %vm857, %v822, 0
        %1133 = vmatprep.subr.bf16.mxu0 0
        %1134 = vmatpush1.bf16.msra.mxu0 0
        %1135 = vmatprep.subr.bf16.mxu0 0
        %1136 = vmatpush1.bf16.msra.mxu0 0
        %1137 = vmatprep.subr.bf16.mxu0 0
        %1138 = vmatpush1.bf16.msra.mxu0 0
        %1139 = vmatprep.subr.bf16.mxu0 0
        %1140 = vmatpush1.bf16.msra.mxu0 0
        %1141 = vmatprep.subr.bf16.mxu0 0
        %1142 = vmatpush1.bf16.msra.mxu0 0
        %1143 = vmatprep.subr.bf16.mxu0 0
        %1144 = vmatpush1.bf16.msra.mxu0 0
        %1145 = vmatprep.subr.bf16.mxu0 0
        %1146 = vmatpush1.bf16.msra.mxu0 %v1127
        %1147 = vmatprep.subr.bf16.mxu0 0
        %1148 = vmatpush1.bf16.msra.mxu0 %v1126
        %1149 = vmatprep.subr.bf16.mxu0 0
        %1150 = vmatpush2.bf16.msra.mxu0 0
        %1151 = vmatprep.subr.bf16.mxu0 0
        %1152 = vmatpush2.bf16.msra.mxu0 0
        %1153 = vmatprep.subr.bf16.mxu0 0
        %1154 = vmatpush2.bf16.msra.mxu0 0
        %1155 = vmatprep.subr.bf16.mxu0 0
        %1156 = vmatpush2.bf16.msra.mxu0 0
        %1157 = vmatprep.subr.bf16.mxu0 0
        %1158 = vmatpush2.bf16.msra.mxu0 0
        %1159 = vmatprep.subr.bf16.mxu0 0
        %1160 = vmatpush2.bf16.msra.mxu0 0
        %1161 = vmatprep.subr.bf16.mxu0 0
        %1162 = vmatpush2.bf16.msra.mxu0 0
        %1163 = vmatprep.subr.bf16.mxu0 0
        %1164 = vmatpush2.bf16.msra.mxu0 0
        %1165 = vmatprep.mubr.bf16.mxu0 0
        %1166 = vmatmul.mubr.bf16.gmra.mxu0 %v1131
        %v1167 = vpop.f32.mrf.mxu0
        %v1168 = vadd.f32 %v1111, %v1167
        %v1169 = vpop.f32.mrf.mxu0
        %v1170 = vpop.f32.mrf.mxu0
        %v1171 = vpop.f32.mrf.mxu0
        %1172 = vdwg.mxu0
        %v1177 = vunpack.c.l.b16 %v1100
        %v1178 = vunpack.c.l.b16 %v1101
        %v1179 = vunpack.c.l.b16 %v1102
        %v1180 = vunpack.c.l.b16 %v1103
        %v1181 = vpack.c.b16 %v1178, %v1177
        %v1182 = vpack.c.b16 %v1180, %v1179
        %1185 = vmatprep.subr.bf16.mxu0 0
        %1186 = vmatpush1.bf16.msra.mxu0 0
        %1187 = vmatprep.subr.bf16.mxu0 0
        %1188 = vmatpush1.bf16.msra.mxu0 0
        %1189 = vmatprep.subr.bf16.mxu0 0
        %1190 = vmatpush1.bf16.msra.mxu0 0
        %1191 = vmatprep.subr.bf16.mxu0 0
        %1192 = vmatpush1.bf16.msra.mxu0 0
        %1193 = vmatprep.subr.bf16.mxu0 0
        %1194 = vmatpush1.bf16.msra.mxu0 0
        %1195 = vmatprep.subr.bf16.mxu0 0
        %1196 = vmatpush1.bf16.msra.mxu0 0
        %1197 = vmatprep.subr.bf16.mxu0 0
        %1198 = vmatpush1.bf16.msra.mxu0 %v1182
        %1199 = vmatprep.subr.bf16.mxu0 0
        %1200 = vmatpush1.bf16.msra.mxu0 %v1181
        %1201 = vmatprep.subr.bf16.mxu0 0
        %1202 = vmatpush2.bf16.msra.mxu0 0
        %1203 = vmatprep.subr.bf16.mxu0 0
        %1204 = vmatpush2.bf16.msra.mxu0 0
        %1205 = vmatprep.subr.bf16.mxu0 0
        %1206 = vmatpush2.bf16.msra.mxu0 0
        %1207 = vmatprep.subr.bf16.mxu0 0
        %1208 = vmatpush2.bf16.msra.mxu0 0
        %1209 = vmatprep.subr.bf16.mxu0 0
        %1210 = vmatpush2.bf16.msra.mxu0 0
        %1211 = vmatprep.subr.bf16.mxu0 0
        %1212 = vmatpush2.bf16.msra.mxu0 0
        %1213 = vmatprep.subr.bf16.mxu0 0
        %1214 = vmatpush2.bf16.msra.mxu0 0
        %1215 = vmatprep.subr.bf16.mxu0 0
        %1216 = vmatpush2.bf16.msra.mxu0 0
        %1217 = vmatprep.mubr.bf16.mxu0 0
        %1218 = vmatmul.mubr.bf16.gmra.mxu0 %v1131
        %v1219 = vpop.f32.mrf.mxu0
        %v1220 = vadd.f32 %v1115, %v1219
        %v1221 = vpop.f32.mrf.mxu0
        %v1222 = vpop.f32.mrf.mxu0
        %v1223 = vpop.f32.mrf.mxu0
        %1224 = vdwg.mxu0
        %v1225 = vmul.f32 %v1168, %v1092
        %v1226 = vmul.f32 %v1220, %v1092
        %v1227 = vmul.f32 %v958, 0.25
        %v1228 = vmul.f32 %v959, 0.25
        %v1229 = vpack.c.bf16 %v1227, %v1227
        %v1230 = vpack.c.bf16 %v1228, %v1228
        %v1231 = vpack.c.bf16 %v1094, %v1094
        %v1232 = vpack.c.bf16 %v1095, %v1095
        %vm1233 = vcmask 130048
        %v1235 = vsel %vm1233, %v1229, 0
        %v1238 = vsel %vm1233, %v1231, 0
        %1240 = vmatprep.subr.bf16.mxu0 0
        %1241 = vmatpush1.bf16.xpose.msra.mxu0 0
        %1242 = vmatprep.subr.bf16.mxu0 0
        %1243 = vmatpush1.bf16.xpose.msra.mxu0 0
        %1244 = vmatprep.subr.bf16.mxu0 0
        %1245 = vmatpush1.bf16.xpose.msra.mxu0 0
        %1246 = vmatprep.subr.bf16.mxu0 0
        %1247 = vmatpush1.bf16.xpose.msra.mxu0 0
        %1248 = vmatprep.subr.bf16.mxu0 0
        %1249 = vmatpush1.bf16.xpose.msra.mxu0 0
        %1250 = vmatprep.subr.bf16.mxu0 0
        %1251 = vmatpush1.bf16.xpose.msra.mxu0 0
        %1252 = vmatprep.subr.bf16.mxu0 0
        %1253 = vmatpush1.bf16.xpose.msra.mxu0 0
        %1254 = vmatprep.subr.bf16.mxu0 0
        %1255 = vmatpush1.bf16.xpose.msra.mxu0 %v1238
        %1256 = vmatprep.subr.bf16.mxu0 0
        %1257 = vmatpush2.bf16.xpose.msra.mxu0 0
        %1258 = vmatprep.subr.bf16.mxu0 0
        %1259 = vmatpush2.bf16.xpose.msra.mxu0 0
        %1260 = vmatprep.subr.bf16.mxu0 0
        %1261 = vmatpush2.bf16.xpose.msra.mxu0 0
        %1262 = vmatprep.subr.bf16.mxu0 0
        %1263 = vmatpush2.bf16.xpose.msra.mxu0 0
        %1264 = vmatprep.subr.bf16.mxu0 0
        %1265 = vmatpush2.bf16.xpose.msra.mxu0 0
        %1266 = vmatprep.subr.bf16.mxu0 0
        %1267 = vmatpush2.bf16.xpose.msra.mxu0 0
        %1268 = vmatprep.subr.bf16.mxu0 0
        %1269 = vmatpush2.bf16.xpose.msra.mxu0 0
        %1270 = vmatprep.subr.bf16.mxu0 0
        %1271 = vmatpush2.bf16.xpose.msra.mxu0 0
        %1272 = vmatprep.mubr.bf16.mxu0 0
        %1273 = vmatmul.mubr.bf16.gmra.mxu0 %v1235
        %v1274 = vpop.f32.mrf.mxu0
        %v1275 = vadd.f32 0.0, %v1274
        %v1276 = vpop.f32.mrf.mxu0
        %v1277 = vpop.f32.mrf.mxu0
        %v1278 = vpop.f32.mrf.mxu0
        %1279 = vdwg.mxu0
        %v1281 = vsel %vm1233, %v1230, 0
        %v1284 = vsel %vm1233, %v1232, 0
        %1286 = vmatprep.subr.bf16.mxu0 0
        %1287 = vmatpush1.bf16.xpose.msra.mxu0 0
        %1288 = vmatprep.subr.bf16.mxu0 0
        %1289 = vmatpush1.bf16.xpose.msra.mxu0 0
        %1290 = vmatprep.subr.bf16.mxu0 0
        %1291 = vmatpush1.bf16.xpose.msra.mxu0 0
        %1292 = vmatprep.subr.bf16.mxu0 0
        %1293 = vmatpush1.bf16.xpose.msra.mxu0 0
        %1294 = vmatprep.subr.bf16.mxu0 0
        %1295 = vmatpush1.bf16.xpose.msra.mxu0 0
        %1296 = vmatprep.subr.bf16.mxu0 0
        %1297 = vmatpush1.bf16.xpose.msra.mxu0 0
        %1298 = vmatprep.subr.bf16.mxu0 0
        %1299 = vmatpush1.bf16.xpose.msra.mxu0 0
        %1300 = vmatprep.subr.bf16.mxu0 0
        %1301 = vmatpush1.bf16.xpose.msra.mxu0 %v1284
        %1302 = vmatprep.subr.bf16.mxu0 0
        %1303 = vmatpush2.bf16.xpose.msra.mxu0 0
        %1304 = vmatprep.subr.bf16.mxu0 0
        %1305 = vmatpush2.bf16.xpose.msra.mxu0 0
        %1306 = vmatprep.subr.bf16.mxu0 0
        %1307 = vmatpush2.bf16.xpose.msra.mxu0 0
        %1308 = vmatprep.subr.bf16.mxu0 0
        %1309 = vmatpush2.bf16.xpose.msra.mxu0 0
        %1310 = vmatprep.subr.bf16.mxu0 0
        %1311 = vmatpush2.bf16.xpose.msra.mxu0 0
        %1312 = vmatprep.subr.bf16.mxu0 0
        %1313 = vmatpush2.bf16.xpose.msra.mxu0 0
        %1314 = vmatprep.subr.bf16.mxu0 0
        %1315 = vmatpush2.bf16.xpose.msra.mxu0 0
        %1316 = vmatprep.subr.bf16.mxu0 0
        %1317 = vmatpush2.bf16.xpose.msra.mxu0 0
        %1318 = vmatprep.mubr.bf16.mxu0 0
        %1319 = vmatmul.mubr.bf16.gmra.mxu0 %v1281
        %v1320 = vpop.f32.mrf.mxu0
        %v1321 = vadd.f32 0.0, %v1320
        %v1322 = vpop.f32.mrf.mxu0
        %v1323 = vpop.f32.mrf.mxu0
        %v1324 = vpop.f32.mrf.mxu0
        %1325 = vdwg.mxu0
        %v1326 = vsub.f32 %v1275, %v819
        %v1327 = vsub.f32 %v1321, %v819
        %vm1328 = vcmask 64512
        %v1329 = vsel %vm1328, %v1326, -inf
        %1330 = vmax.xlane.f32.xlu0 %v1329
        %v1331 = vpop.xlane.xlu0 %1330
        %v1332 = vsel %vm1328, %v1327, -inf
        %1333 = vmax.xlane.f32.xlu0 %v1332
        %v1334 = vpop.xlane.xlu0 %1333
        %v1335 = vsub.f32 %v1326, %v1331
        %v1336 = vsub.f32 %v1327, %v1334
        %v1337 = vmul.f32 %v1335, 1.442695
        %v1338 = vpow.pop %v1337
        %v1339 = vmul.f32 %v1336, 1.442695
        %v1340 = vpow.pop %v1339
        %v1341 = vsel %vm1328, %v1338, 0.0
        %1342 = vadd.xlane.f32.xlu0 %v1341
        %v1343 = vpop.xlane.xlu0 %1342
        %v1344 = vsel %vm1328, %v1340, 0.0
        %1345 = vadd.xlane.f32.xlu0 %v1344
        %v1346 = vpop.xlane.xlu0 %1345
        %v1347 = vrcp.pop %v1343
        %v1348 = vrcp.pop %v1346
        %v1349 = vmul.f32 %v1338, %v1347
        %v1350 = vmul.f32 %v1340, %v1348
        %v1351 = vpack.c.bf16 %v1349, %v1349
        %v1352 = vpack.c.bf16 %v1350, %v1350
        %v1353 = vpack.c.bf16 %v1225, %v1225
        %v1354 = vpack.c.bf16 %v1226, %v1226
        %v1356 = vsel %vm1328, %v1351, 0
        %vm1358 = vcmask 1043456
        %v1360 = vsel %vm1358, %v1353, 0
        %1362 = vmatprep.subr.bf16.mxu0 0
        %1363 = vmatpush1.bf16.msra.mxu0 0
        %1364 = vmatprep.subr.bf16.mxu0 0
        %1365 = vmatpush1.bf16.msra.mxu0 0
        %1366 = vmatprep.subr.bf16.mxu0 0
        %1367 = vmatpush1.bf16.msra.mxu0 0
        %1368 = vmatprep.subr.bf16.mxu0 0
        %1369 = vmatpush1.bf16.msra.mxu0 0
        %1370 = vmatprep.subr.bf16.mxu0 0
        %1371 = vmatpush1.bf16.msra.mxu0 0
        %1372 = vmatprep.subr.bf16.mxu0 0
        %1373 = vmatpush1.bf16.msra.mxu0 0
        %1374 = vmatprep.subr.bf16.mxu0 0
        %1375 = vmatpush1.bf16.msra.mxu0 0
        %1376 = vmatprep.subr.bf16.mxu0 0
        %1377 = vmatpush1.bf16.msra.mxu0 %v1360
        %1378 = vmatprep.subr.bf16.mxu0 0
        %1379 = vmatpush2.bf16.msra.mxu0 0
        %1380 = vmatprep.subr.bf16.mxu0 0
        %1381 = vmatpush2.bf16.msra.mxu0 0
        %1382 = vmatprep.subr.bf16.mxu0 0
        %1383 = vmatpush2.bf16.msra.mxu0 0
        %1384 = vmatprep.subr.bf16.mxu0 0
        %1385 = vmatpush2.bf16.msra.mxu0 0
        %1386 = vmatprep.subr.bf16.mxu0 0
        %1387 = vmatpush2.bf16.msra.mxu0 0
        %1388 = vmatprep.subr.bf16.mxu0 0
        %1389 = vmatpush2.bf16.msra.mxu0 0
        %1390 = vmatprep.subr.bf16.mxu0 0
        %1391 = vmatpush2.bf16.msra.mxu0 0
        %1392 = vmatprep.subr.bf16.mxu0 0
        %1393 = vmatpush2.bf16.msra.mxu0 0
        %1394 = vmatprep.mubr.bf16.mxu0 0
        %1395 = vmatmul.mubr.bf16.gmra.mxu0 %v1356
        %v1396 = vpop.f32.mrf.mxu0
        %v1397 = vadd.f32 0.0, %v1396
        %v1398 = vpop.f32.mrf.mxu0
        %v1399 = vpop.f32.mrf.mxu0
        %v1400 = vpop.f32.mrf.mxu0
        %1401 = vdwg.mxu0
        %v1403 = vsel %vm1328, %v1352, 0
        %v1406 = vsel %vm1358, %v1354, 0
        %1408 = vmatprep.subr.bf16.mxu0 0
        %1409 = vmatpush1.bf16.msra.mxu0 0
        %1410 = vmatprep.subr.bf16.mxu0 0
        %1411 = vmatpush1.bf16.msra.mxu0 0
        %1412 = vmatprep.subr.bf16.mxu0 0
        %1413 = vmatpush1.bf16.msra.mxu0 0
        %1414 = vmatprep.subr.bf16.mxu0 0
        %1415 = vmatpush1.bf16.msra.mxu0 0
        %1416 = vmatprep.subr.bf16.mxu0 0
        %1417 = vmatpush1.bf16.msra.mxu0 0
        %1418 = vmatprep.subr.bf16.mxu0 0
        %1419 = vmatpush1.bf16.msra.mxu0 0
        %1420 = vmatprep.subr.bf16.mxu0 0
        %1421 = vmatpush1.bf16.msra.mxu0 0
        %1422 = vmatprep.subr.bf16.mxu0 0
        %1423 = vmatpush1.bf16.msra.mxu0 %v1406
        %1424 = vmatprep.subr.bf16.mxu0 0
        %1425 = vmatpush2.bf16.msra.mxu0 0
        %1426 = vmatprep.subr.bf16.mxu0 0
        %1427 = vmatpush2.bf16.msra.mxu0 0
        %1428 = vmatprep.subr.bf16.mxu0 0
        %1429 = vmatpush2.bf16.msra.mxu0 0
        %1430 = vmatprep.subr.bf16.mxu0 0
        %1431 = vmatpush2.bf16.msra.mxu0 0
        %1432 = vmatprep.subr.bf16.mxu0 0
        %1433 = vmatpush2.bf16.msra.mxu0 0
        %1434 = vmatprep.subr.bf16.mxu0 0
        %1435 = vmatpush2.bf16.msra.mxu0 0
        %1436 = vmatprep.subr.bf16.mxu0 0
        %1437 = vmatpush2.bf16.msra.mxu0 0
        %1438 = vmatprep.subr.bf16.mxu0 0
        %1439 = vmatpush2.bf16.msra.mxu0 0
        %1440 = vmatprep.mubr.bf16.mxu0 0
        %1441 = vmatmul.mubr.bf16.gmra.mxu0 %v1403
        %v1442 = vpop.f32.mrf.mxu0
        %v1443 = vadd.f32 0.0, %v1442
        %v1444 = vpop.f32.mrf.mxu0
        %v1445 = vpop.f32.mrf.mxu0
        %v1446 = vpop.f32.mrf.mxu0
        %1447 = vdwg.mxu0
        %v1448 = vpack.c.bf16 %v1397, %v1397
        %v1449 = vpack.c.bf16 %v1443, %v1443
        %v1450 = vld [vmem:[%s13] sm:$0xf]
        %v1451 = vld [vmem:[%s13 + $0x4] sm:$0xf]
        %v1452 = vld [vmem:[%s13 + $0x8] sm:$0xf]
        %v1453 = vld [vmem:[%s13 + $0xc] sm:$0xf]
        %v1456 = vunpack.c.l.b16 %v1450
        %v1457 = vunpack.c.l.b16 %v1451
        %v1458 = vpack.c.b16 %v1457, %v1456
        %v1461 = vsel %vm1233, %v1448, 0
        %1463 = vmatprep.subr.bf16.mxu0 0
        %1464 = vmatpush1.bf16.msra.mxu0 0
        %1465 = vmatprep.subr.bf16.mxu0 0
        %1466 = vmatpush1.bf16.msra.mxu0 0
        %1467 = vmatprep.subr.bf16.mxu0 0
        %1468 = vmatpush1.bf16.msra.mxu0 0
        %1469 = vmatprep.subr.bf16.mxu0 0
        %1470 = vmatpush1.bf16.msra.mxu0 0
        %1471 = vmatprep.subr.bf16.mxu0 0
        %1472 = vmatpush1.bf16.msra.mxu0 0
        %1473 = vmatprep.subr.bf16.mxu0 0
        %1474 = vmatpush1.bf16.msra.mxu0 0
        %1475 = vmatprep.subr.bf16.mxu0 0
        %1476 = vmatpush1.bf16.msra.mxu0 0
        %1477 = vmatprep.subr.bf16.mxu0 0
        %1478 = vmatpush1.bf16.msra.mxu0 %v1458
        %1479 = vmatprep.subr.bf16.mxu0 0
        %1480 = vmatpush2.bf16.msra.mxu0 0
        %1481 = vmatprep.subr.bf16.mxu0 0
        %1482 = vmatpush2.bf16.msra.mxu0 0
        %1483 = vmatprep.subr.bf16.mxu0 0
        %1484 = vmatpush2.bf16.msra.mxu0 0
        %1485 = vmatprep.subr.bf16.mxu0 0
        %1486 = vmatpush2.bf16.msra.mxu0 0
        %1487 = vmatprep.subr.bf16.mxu0 0
        %1488 = vmatpush2.bf16.msra.mxu0 0
        %1489 = vmatprep.subr.bf16.mxu0 0
        %1490 = vmatpush2.bf16.msra.mxu0 0
        %1491 = vmatprep.subr.bf16.mxu0 0
        %1492 = vmatpush2.bf16.msra.mxu0 0
        %1493 = vmatprep.subr.bf16.mxu0 0
        %1494 = vmatpush2.bf16.msra.mxu0 0
        %1495 = vmatprep.mubr.bf16.mxu0 0
        %1496 = vmatmul.mubr.bf16.gmra.mxu0 %v1461
        %v1497 = vpop.f32.mrf.mxu0
        %v1498 = vadd.f32 0.0, %v1497
        %v1499 = vpop.f32.mrf.mxu0
        %v1500 = vpop.f32.mrf.mxu0
        %v1501 = vpop.f32.mrf.mxu0
        %1502 = vdwg.mxu0
        %v1505 = vunpack.c.l.b16 %v1452
        %v1506 = vunpack.c.l.b16 %v1453
        %v1507 = vpack.c.b16 %v1506, %v1505
        %v1510 = vsel %vm1233, %v1449, 0
        %1512 = vmatprep.subr.bf16.mxu0 0
        %1513 = vmatpush1.bf16.msra.mxu0 0
        %1514 = vmatprep.subr.bf16.mxu0 0
        %1515 = vmatpush1.bf16.msra.mxu0 0
        %1516 = vmatprep.subr.bf16.mxu0 0
        %1517 = vmatpush1.bf16.msra.mxu0 0
        %1518 = vmatprep.subr.bf16.mxu0 0
        %1519 = vmatpush1.bf16.msra.mxu0 0
        %1520 = vmatprep.subr.bf16.mxu0 0
        %1521 = vmatpush1.bf16.msra.mxu0 0
        %1522 = vmatprep.subr.bf16.mxu0 0
        %1523 = vmatpush1.bf16.msra.mxu0 0
        %1524 = vmatprep.subr.bf16.mxu0 0
        %1525 = vmatpush1.bf16.msra.mxu0 0
        %1526 = vmatprep.subr.bf16.mxu0 0
        %1527 = vmatpush1.bf16.msra.mxu0 %v1507
        %1528 = vmatprep.subr.bf16.mxu0 0
        %1529 = vmatpush2.bf16.msra.mxu0 0
        %1530 = vmatprep.subr.bf16.mxu0 0
        %1531 = vmatpush2.bf16.msra.mxu0 0
        %1532 = vmatprep.subr.bf16.mxu0 0
        %1533 = vmatpush2.bf16.msra.mxu0 0
        %1534 = vmatprep.subr.bf16.mxu0 0
        %1535 = vmatpush2.bf16.msra.mxu0 0
        %1536 = vmatprep.subr.bf16.mxu0 0
        %1537 = vmatpush2.bf16.msra.mxu0 0
        %1538 = vmatprep.subr.bf16.mxu0 0
        %1539 = vmatpush2.bf16.msra.mxu0 0
        %1540 = vmatprep.subr.bf16.mxu0 0
        %1541 = vmatpush2.bf16.msra.mxu0 0
        %1542 = vmatprep.subr.bf16.mxu0 0
        %1543 = vmatpush2.bf16.msra.mxu0 0
        %1544 = vmatprep.mubr.bf16.mxu0 0
        %1545 = vmatmul.mubr.bf16.gmra.mxu0 %v1510
        %v1546 = vpop.f32.mrf.mxu0
        %v1547 = vadd.f32 0.0, %v1546
        %v1548 = vpop.f32.mrf.mxu0
        %v1549 = vpop.f32.mrf.mxu0
        %v1550 = vpop.f32.mrf.mxu0
        %1551 = vdwg.mxu0
        %v1552 = vsel %vm857, %v1498, 0.0
        %v1553 = vsel %vm857, %v1547, 0.0
        %v1554 = vadd.f32 %v1552, %v1553
        %v1555 = vld [vmem:[%s14] sm:$0x1]
        %v1557 = vlaneseq
        %v1558 = vshrl.u32 %v1557, 7
        %v1559 = vsub.s32 0, %v1558
        %v1560 = vrot.slane %v1555, %v1559
        %v1562 = vadd.f32 %v1554, %v1560
        %1564 = vset.pattern.permute.xlu0 0
        %1565 = vperm.xlu0 %1564, %v818
        %v1566 = vpop.permute.xlu0 %1565
        %v1568 = vmul.f32 %v1562, %v1566
        %v1569 = vld [vmem:[%s15] sm:$0x1]
        %v1570 = vld [vmem:[%s16] sm:$0x1]
        %v1571 = vadd.f32 %v1568, %v813
        %v1572 = vsel %vm857, %v1571, 0.0
        %1573 = vadd.xlane.f32.xlu0 %v1572
        %v1574 = vpop.xlane.xlu0 %1573
        %v1575 = vrcp.pop 32.0
        %v1576 = vmul.f32 %v1574, %v1575
        %v1577 = vsub.f32 %v1571, %v1576
        %v1578 = vmul.f32 %v1577, %v1577
        %v1579 = vsel %vm857, %v1578, 0.0
        %1580 = vadd.xlane.f32.xlu0 %v1579
        %v1581 = vpop.xlane.xlu0 %1580
        %v1582 = vmul.f32 %v1581, %v1575
        %v1583 = vadd.f32 %v1582, 1e-05
        %v1584 = vrsqrt.pop %v1583
        %v1585 = vmul.f32 %v1577, %v1584
        %v1587 = vlaneseq
        %v1588 = vshrl.u32 %v1587, 7
        %v1589 = vsub.s32 0, %v1588
        %v1590 = vrot.slane %v1569, %v1589
        %v1592 = vmul.f32 %v1585, %v1590
        %v1594 = vlaneseq
        %v1595 = vshrl.u32 %v1594, 7
        %v1596 = vsub.s32 0, %v1595
        %v1597 = vrot.slane %v1570, %v1596
        %v1599 = vadd.f32 %v1592, %v1597
        %v1600 = vpack.c.bf16 %v1599, %v1599
        %v1601 = vld [vmem:[%s17] sm:$0xf]
        %v1602 = vld [vmem:[%s17 + $0x4] sm:$0xf]
        %v1603 = vld [vmem:[%s17 + $0x8] sm:$0xf]
        %v1604 = vld [vmem:[%s17 + $0xc] sm:$0xf]
        %v1605 = vld [vmem:[%s18] sm:$0x1]
        %v1607 = vlaneseq
        %v1608 = vshrl.u32 %v1607, 7
        %v1609 = vsub.s32 0, %v1608
        %v1610 = vrot.slane %v1605, %v1609
        %v1616 = vunpack.c.l.b16 %v1601
        %v1617 = vunpack.c.l.b16 %v1602
        %v1618 = vunpack.c.l.b16 %v1603
        %v1619 = vunpack.c.l.b16 %v1604
        %v1620 = vpack.c.b16 %v1617, %v1616
        %v1621 = vpack.c.b16 %v1619, %v1618
        %v1625 = vsel %vm857, %v1600, 0
        %1627 = vmatprep.subr.bf16.mxu0 0
        %1628 = vmatpush1.bf16.msra.mxu0 0
        %1629 = vmatprep.subr.bf16.mxu0 0
        %1630 = vmatpush1.bf16.msra.mxu0 0
        %1631 = vmatprep.subr.bf16.mxu0 0
        %1632 = vmatpush1.bf16.msra.mxu0 0
        %1633 = vmatprep.subr.bf16.mxu0 0
        %1634 = vmatpush1.bf16.msra.mxu0 0
        %1635 = vmatprep.subr.bf16.mxu0 0
        %1636 = vmatpush1.bf16.msra.mxu0 0
        %1637 = vmatprep.subr.bf16.mxu0 0
        %1638 = vmatpush1.bf16.msra.mxu0 0
        %1639 = vmatprep.subr.bf16.mxu0 0
        %1640 = vmatpush1.bf16.msra.mxu0 %v1621
        %1641 = vmatprep.subr.bf16.mxu0 0
        %1642 = vmatpush1.bf16.msra.mxu0 %v1620
        %1643 = vmatprep.subr.bf16.mxu0 0
        %1644 = vmatpush2.bf16.msra.mxu0 0
        %1645 = vmatprep.subr.bf16.mxu0 0
        %1646 = vmatpush2.bf16.msra.mxu0 0
        %1647 = vmatprep.subr.bf16.mxu0 0
        %1648 = vmatpush2.bf16.msra.mxu0 0
        %1649 = vmatprep.subr.bf16.mxu0 0
        %1650 = vmatpush2.bf16.msra.mxu0 0
        %1651 = vmatprep.subr.bf16.mxu0 0
        %1652 = vmatpush2.bf16.msra.mxu0 0
        %1653 = vmatprep.subr.bf16.mxu0 0
        %1654 = vmatpush2.bf16.msra.mxu0 0
        %1655 = vmatprep.subr.bf16.mxu0 0
        %1656 = vmatpush2.bf16.msra.mxu0 0
        %1657 = vmatprep.subr.bf16.mxu0 0
        %1658 = vmatpush2.bf16.msra.mxu0 0
        %1659 = vmatprep.mubr.bf16.mxu0 0
        %1660 = vmatmul.mubr.bf16.gmra.mxu0 %v1625
        %v1661 = vpop.f32.mrf.mxu0
        %v1662 = vadd.f32 %v1610, %v1661
        %v1663 = vpop.f32.mrf.mxu0
        %v1664 = vpop.f32.mrf.mxu0
        %v1665 = vpop.f32.mrf.mxu0
        %1666 = vdwg.mxu0
        %v1667 = vmul.f32 %v1662, 0.5
        %v1668 = vmul.f32 %v1662, %v1662
        %v1669 = vmul.f32 %v1662, %v1668
        %v1670 = vmul.f32 %v1669, 0.044715
        %v1671 = vadd.f32 %v1662, %v1670
        %v1672 = vmul.f32 %v1671, 0.7978846
        %v1673 = vtanh.pop %v1672
        %v1674 = vadd.f32 %v1673, 1.0
        %v1675 = vmul.f32 %v1667, %v1674
        %v1676 = vpack.c.bf16 %v1675, %v1675
        %v1677 = vld [vmem:[%s19] sm:$0xf]
        %v1678 = vld [vmem:[%s19 + $0x4] sm:$0xf]
        %v1679 = vld [vmem:[%s19 + $0x8] sm:$0xf]
        %v1680 = vld [vmem:[%s19 + $0xc] sm:$0xf]
        %v1681 = vld [vmem:[%s19 + $0x10] sm:$0xf]
        %v1682 = vld [vmem:[%s19 + $0x14] sm:$0xf]
        %v1683 = vld [vmem:[%s19 + $0x18] sm:$0xf]
        %v1684 = vld [vmem:[%s19 + $0x1c] sm:$0xf]
        %v1685 = vld [vmem:[%s20] sm:$0x1]
        %v1687 = vlaneseq
        %v1688 = vshrl.u32 %v1687, 7
        %v1689 = vsub.s32 0, %v1688
        %v1690 = vrot.slane %v1685, %v1689
        %v1700 = vunpack.c.l.b16 %v1677
        %v1701 = vunpack.c.l.b16 %v1678
        %v1702 = vunpack.c.l.b16 %v1679
        %v1703 = vunpack.c.l.b16 %v1680
        %v1704 = vunpack.c.l.b16 %v1681
        %v1705 = vunpack.c.l.b16 %v1682
        %v1706 = vunpack.c.l.b16 %v1683
        %v1707 = vunpack.c.l.b16 %v1684
        %v1708 = vpack.c.b16 %v1701, %v1700
        %v1709 = vpack.c.b16 %v1703, %v1702
        %v1710 = vpack.c.b16 %v1705, %v1704
        %v1711 = vpack.c.b16 %v1707, %v1706
        %vm1716 = vcmask 523264
        %v1718 = vsel %vm1716, %v1676, 0
        %1720 = vmatprep.subr.bf16.mxu0 0
        %1721 = vmatpush1.bf16.msra.mxu0 0
        %1722 = vmatprep.subr.bf16.mxu0 0
        %1723 = vmatpush1.bf16.msra.mxu0 0
        %1724 = vmatprep.subr.bf16.mxu0 0
        %1725 = vmatpush1.bf16.msra.mxu0 0
        %1726 = vmatprep.subr.bf16.mxu0 0
        %1727 = vmatpush1.bf16.msra.mxu0 0
        %1728 = vmatprep.subr.bf16.mxu0 0
        %1729 = vmatpush1.bf16.msra.mxu0 %v1711
        %1730 = vmatprep.subr.bf16.mxu0 0
        %1731 = vmatpush1.bf16.msra.mxu0 %v1710
        %1732 = vmatprep.subr.bf16.mxu0 0
        %1733 = vmatpush1.bf16.msra.mxu0 %v1709
        %1734 = vmatprep.subr.bf16.mxu0 0
        %1735 = vmatpush1.bf16.msra.mxu0 %v1708
        %1736 = vmatprep.subr.bf16.mxu0 0
        %1737 = vmatpush2.bf16.msra.mxu0 0
        %1738 = vmatprep.subr.bf16.mxu0 0
        %1739 = vmatpush2.bf16.msra.mxu0 0
        %1740 = vmatprep.subr.bf16.mxu0 0
        %1741 = vmatpush2.bf16.msra.mxu0 0
        %1742 = vmatprep.subr.bf16.mxu0 0
        %1743 = vmatpush2.bf16.msra.mxu0 0
        %1744 = vmatprep.subr.bf16.mxu0 0
        %1745 = vmatpush2.bf16.msra.mxu0 0
        %1746 = vmatprep.subr.bf16.mxu0 0
        %1747 = vmatpush2.bf16.msra.mxu0 0
        %1748 = vmatprep.subr.bf16.mxu0 0
        %1749 = vmatpush2.bf16.msra.mxu0 0
        %1750 = vmatprep.subr.bf16.mxu0 0
        %1751 = vmatpush2.bf16.msra.mxu0 0
        %1752 = vmatprep.mubr.bf16.mxu0 0
        %1753 = vmatmul.mubr.bf16.gmra.mxu0 %v1718
        %v1754 = vpop.f32.mrf.mxu0
        %v1755 = vadd.f32 %v1690, %v1754
        %v1756 = vpop.f32.mrf.mxu0
        %v1757 = vpop.f32.mrf.mxu0
        %v1758 = vpop.f32.mrf.mxu0
        %1759 = vdwg.mxu0
        %v1760 = vadd.f32 %v1755, %v1599
        %v1761 = vsel %vm857, %v1760, 0.0
        %1762 = vadd.xlane.f32.xlu0 %v1761
        %v1763 = vpop.xlane.xlu0 %1762
        %v1764 = vmul.f32 %v1763, %v1575
        %v1765 = vsub.f32 %v1760, %v1764
        %v1766 = vmul.f32 %v1765, %v1765
        %v1767 = vsel %vm857, %v1766, 0.0
        %1768 = vadd.xlane.f32.xlu0 %v1767
        %v1769 = vpop.xlane.xlu0 %1768
        %v1770 = vmul.f32 %v1769, %v1575
        %v1771 = vadd.f32 %v1770, 1e-05
        %v1772 = vrsqrt.pop %v1771
        %v1773 = vmul.f32 %v1765, %v1772
        %v1774 = vmul.f32 %v1773, %v1590
        %v1775 = vadd.f32 %v1774, %v1597
        %v1776 = vsel %vm857, %v1775, 0.0
        %1777 = vst [vmem:[%s771] sm:$0xff] %v1776
        %s1778 = sand.u32 %s541, 1
        %s1779 = scalar_lea.sflag [#allocation3], %s1778
        %s1780 = sand.u32 %s541, 1
        %s1781 = smul.addr %s1780, 8
        %s1782 = scalar_lea.vmem [#allocation2], %s1781
        // Predicated region
        $region105: #{tpu_custom_call.1} parent=103 // pred_check
          %p1783 = pneg %p551
        $region106: #{tpu_custom_call.1} parent=103 // pred_check_branch
          %1785 = sbr.rel (%p1783) target = $region108
        $region107: #{tpu_custom_call.1} parent=103 // pred_region
          %s1787 = ssub.s32 128, 128
          %1788 = vsyncadd %s1779, %s1787
          %s1789 = sadd.s32 %s40, %s39
          %s1790 = smul.addr %s1789, 128
          %s1791 = scalar_lea.hbm %s21, %s1790
          %s1793 = sshll.u32 %s1782, 4
          %s1794 = int_to_ptr.vmem [resolvable:$true] %s1793
          %1796 = dma.vmem_to_hbm [thread:$0]  %s1794, 128, %s1791, %s1779
        $region108: #{tpu_custom_call.1} parent=103 // pred_fallthru
          _
      $region104: #{tpu_custom_call.1} parent=5 // pred_fallthru
        _
      %p1797 = scmp.le.s32.totalorder 2, %s30
      // Predicated region
      $region109: #{tpu_custom_call.1} parent=5 // pred_check
        %p1798 = pneg %p1797
      $region110: #{tpu_custom_call.1} parent=5 // pred_check_branch
        %1800 = sbr.rel (%p1798) target = $region112
      $region111: #{tpu_custom_call.1} parent=5 // pred_region
        %s1801 = ssub.s32 %s30, 2
        // Predicated region
        $region113: #{tpu_custom_call.1} parent=111 // pred_check
          %p1802 = pneg %p557
        $region114: #{tpu_custom_call.1} parent=111 // pred_check_branch
          %1804 = sbr.rel (%p1802) target = $region116
        $region115: #{tpu_custom_call.1} parent=111 // pred_region
          %s1805 = sand.u32 %s542, 1
          %s1806 = scalar_lea.sflag [#allocation3], %s1805
          %s1807 = sand.u32 %s542, 1
          %s1808 = smul.addr %s1807, 8
          %s1809 = scalar_lea.vmem [#allocation2], %s1808
          %1810 = dma.done %s1806, 128
        $region116: #{tpu_custom_call.1} parent=111 // pred_fallthru
          _
      $region112: #{tpu_custom_call.1} parent=5 // pred_fallthru
        _
    $region6: #{tpu_custom_call.1} parent=1 // loop_footer
      %s34 = sadd.s32 1, %s30
    $region7: #{tpu_custom_call.1} parent=1 // loop_footer_branch
      %29 = sbr.rel target = $region3
    $region8: #{tpu_custom_call.1} parent=1 // loop_exit
      _
    %1811 = vsyncpa [#allocation3], 1
    %s1812 = scalar_lea.sflag [#allocation3], 1
    %1813 = vsyncpa %s1812, 1

</llo_original>
